<compile_context>
chip_gen: v5e
topology: v5e:2x2
jax: 0.10.0
libtpu: 0.0.40
codegen_flags: <defaults>
</compile_context>

<pallas_src>
import functools
import math

import jax
import jax.numpy as jnp
import numpy as np
from jax import lax
from jax.experimental import pallas as pl
from jax.experimental.pallas import tpu as pltpu


def _vmem_capacity_bytes():
    """Per-core VMEM capacity, with a conservative (v7x) fallback."""
    try:
        info = pltpu.get_tpu_info()
        cap = getattr(info, "vmem_capacity_bytes", None)
        if cap:
            return int(cap)
    except Exception:
        pass
    return 64 * 1024 * 1024


def _diff_attn_kernel(xkv_ref, wq_ref, wkv_ref, wp_ref, bp_ref, out_ref,
                      o_slab_ref, kv_buf_ref, *maybe_acc, scale, lambda_param,
                      head_dim, heads_per_block, num_head_blocks, num_q_tiles,
                      q_tile, eps, mxu_dtype, use_kv_cache):
    D = head_dim
    Ht = heads_per_block
    tq = q_tile
    qi = pl.program_id(1)
    hb = pl.program_id(2)
    acc_ref = maybe_acc[0] if num_head_blocks > 1 else None

    # ---- Query rows: slice out of the resident key/value block -------------
    if num_q_tiles == 1:
        xq = xkv_ref[0]                                     # (N, C)
    else:
        q_start = pl.multiple_of(qi * tq, tq)               # tq % 8 == 0 here
        xq = xkv_ref[0, pl.ds(q_start, tq), :]              # (tq, C)

    # ---- Fused KV projection (cached across query tiles when HB == 1) ------
    def compute_kv():
        xkv = xkv_ref[0]                                    # (N, C)
        kv = jnp.dot(xkv, wkv_ref[0], preferred_element_type=jnp.float32)
        kv_buf_ref[...] = kv.astype(kv_buf_ref.dtype)       # (N, Ht*4D)

    if use_kv_cache:
        @pl.when(qi == 0)
        def _():
            compute_kv()
    else:
        compute_kv()

    # ---- Fused Q projection for the whole head block ------------------------
    # One whole-array cast to the MXU dtype (no per-slice casts in the loop).
    q_all = jnp.dot(xq, wq_ref[0],
                    preferred_element_type=jnp.float32).astype(mxu_dtype)

    def _softmax(s):
        m = jnp.max(s, axis=-1, keepdims=True)
        e = jnp.exp(s - m)
        denom = jnp.sum(e, axis=-1, keepdims=True)
        # EUP approximate reciprocal + one Newton step (~f32-exact), instead
        # of N^2 VALU divides.
        r = pl.reciprocal(denom, approx=True)
        r = r * (2.0 - denom * r)
        return e * r

    # Contract the last dims of both operands: q @ k^T without an explicit
    # transpose relayout.
    dn = (((1,), (1,)), ((), ()))

    for t in range(Ht):  # static unroll over heads of the block
        qo = t * 2 * D
        ko = t * 4 * D
        q1 = q_all[:, qo:qo + D]
        q2 = q_all[:, qo + D:qo + 2 * D]
        k1 = kv_buf_ref[:, ko:ko + D]
        k2 = kv_buf_ref[:, ko + D:ko + 2 * D]
        v = kv_buf_ref[:, ko + 2 * D:ko + 4 * D]

        s1 = lax.dot_general(q1, k1, dn, preferred_element_type=jnp.float32) * scale
        s2 = lax.dot_general(q2, k2, dn, preferred_element_type=jnp.float32) * scale
        a1 = _softmax(s1)                              # f32
        a2 = _softmax(s2)                              # f32
        diff = (a1 - lambda_param * a2).astype(mxu_dtype)
        o = jnp.dot(diff, v, preferred_element_type=jnp.float32)  # (tq, 2D) f32

        # LayerNorm statistics only (biased variance, eps = 1e-5);
        # gamma / beta / (1 - lambda_init) are folded into W_proj / bias.
        mu = jnp.mean(o, axis=-1, keepdims=True)
        var = jnp.mean(jnp.square(o - mu), axis=-1, keepdims=True)
        o_n = (o - mu) * lax.rsqrt(var + eps)
        o_slab_ref[:, qo:qo + 2 * D] = o_n.astype(o_slab_ref.dtype)

    # One wide, MXU-friendly output-projection matmul from the slab.
    contrib = jnp.dot(o_slab_ref[...], wp_ref[0],
                      preferred_element_type=jnp.float32)           # (tq, C) f32

    if num_head_blocks == 1:
        # No head-reduction axis: single lane-dense store, folded bias once.
        out_ref[0] = (contrib + bp_ref[...]).astype(out_ref.dtype)
    else:
        @pl.when(hb == 0)
        def _():
            acc_ref[...] = jnp.zeros_like(acc_ref)

        acc_ref[...] += contrib

        @pl.when(hb == num_head_blocks - 1)
        def _():
            out_ref[0] = (acc_ref[...] + bp_ref[...]).astype(out_ref.dtype)


def multi_head_differential_attention(x, params, *, num_heads, layer_idx=1,
                                      heads_per_block=None, q_tile=None,
                                      mxu_dtype=jnp.float32):
    """x: (B, N, C) float32.  Returns (out (B, N, C) float32, None)."""
    B, N, C = x.shape
    H = num_heads
    D = C // H
    assert D * H == C

    Ht = H if heads_per_block is None else heads_per_block
    assert H % Ht == 0
    HB = H // Ht

    scale = float(D) ** (-0.5)
    lambda_param = float(params["lambda_param"])
    lambda_init = 0.8 - 0.6 * math.exp(-0.3 * (layer_idx - 1))
    eps = 1e-5
    f32 = jnp.float32
    itemsize = jnp.dtype(mxu_dtype).itemsize

    # ---- VMEM budgeting clamped to the device ------------------------------
    def vmem_estimate(tq):
        return (
            2 * N * C * itemsize                                        # x block (dbuf)
            + 2 * (C * Ht * 2 * D + C * Ht * 4 * D + Ht * 2 * D * C) * itemsize  # weights (dbuf)
            + 2 * tq * C * 4                                            # out block (dbuf)
            + tq * Ht * 2 * D * (4 + itemsize)                          # q_all f32 temp + o_slab
            + N * Ht * 4 * D * (4 + itemsize)                           # kv f32 temp + kv cache
            + 5 * tq * N * 4                                            # score/softmax/diff temps
            + (tq * C * 4 if HB > 1 else 0))                            # head-reduction acc

    vmem_cap = _vmem_capacity_bytes()
    vmem_target = int(0.8 * vmem_cap)          # ~51 MiB on v7x, ~102 MiB v5e/v6e

    if q_tile is not None:
        tq = q_tile
    else:
        # Largest query tile (divisor of N, multiple of 8, or N itself) that
        # fits the VMEM target; fall back to the smallest candidate.
        cands = [N] + sorted({t for t in range(8, N, 8) if N % t == 0},
                             reverse=True)
        tq = cands[-1]
        for t in cands:
            if vmem_estimate(t) <= vmem_target:
                tq = t
                break
    assert N % tq == 0
    assert tq == N or tq % 8 == 0
    NQ = N // tq

    vmem_est = vmem_estimate(tq)
    vmem_limit = None
    if vmem_est > 24 * 1024 * 1024:
        vmem_limit = int(min(int(vmem_est * 1.4), vmem_target))

    use_kv_cache = (HB == 1 and NQ > 1)

    # ---- Per-head-block weight layouts (built once in the wrapper) ----------
    # wq columns per head h are already [q1_h | q2_h]; same for wk -> [k1|k2].
    wq_h = params["wq"].reshape(C, H, 2 * D).transpose(1, 0, 2)   # (H, C, 2D)
    wk_h = params["wk"].reshape(C, H, 2 * D).transpose(1, 0, 2)   # (H, C, 2D)
    wv_h = params["wv"].reshape(C, H, 2 * D).transpose(1, 0, 2)   # (H, C, 2D)
    wkv_h = jnp.concatenate([wk_h, wv_h], axis=-1)                # (H, C, 4D) [k1|k2|v]

    wq_blk = (wq_h.reshape(HB, Ht, C, 2 * D).transpose(0, 2, 1, 3)
              .reshape(HB, C, Ht * 2 * D)).astype(mxu_dtype)      # (HB, C, Ht*2D)
    wkv_blk = (wkv_h.reshape(HB, Ht, C, 4 * D).transpose(0, 2, 1, 3)
               .reshape(HB, C, Ht * 4 * D)).astype(mxu_dtype)     # (HB, C, Ht*4D)

    # Fold LayerNorm affine + (1 - lambda_init) into the output projection:
    #   ((o_n*gamma + beta)*s) @ Wp + b  ==  o_n @ (diag(gamma*s) Wp) + (beta*s) @ Wp + b
    out_scale = 1.0 - lambda_init
    gamma_t = jnp.tile(params["ln_gamma"].astype(f32), Ht) * out_scale  # (Ht*2D,)
    beta_t = jnp.tile(params["ln_beta"].astype(f32), Ht) * out_scale    # (Ht*2D,)
    wp_blk_f32 = params["w_proj"].astype(f32).reshape(HB, Ht * 2 * D, C)
    b_eff = (params["b_proj"].astype(f32)
             + jnp.einsum("d,bdc->c", beta_t, wp_blk_f32)).reshape(1, C)
    wp_blk = (wp_blk_f32 * gamma_t[None, :, None]).astype(mxu_dtype)    # (HB, Ht*2D, C)

    x_in = x.astype(mxu_dtype)

    kernel = functools.partial(
        _diff_attn_kernel, scale=scale, lambda_param=lambda_param,
        head_dim=D, heads_per_block=Ht, num_head_blocks=HB, num_q_tiles=NQ,
        q_tile=tq, eps=eps, mxu_dtype=mxu_dtype, use_kv_cache=use_kv_cache)

    scratch_shapes = [
        pltpu.VMEM((tq, Ht * 2 * D), mxu_dtype),   # per-head output slab
        pltpu.VMEM((N, Ht * 4 * D), mxu_dtype),    # fused KV projection buffer/cache
    ]
    if HB > 1:
        scratch_shapes.append(pltpu.VMEM((tq, C), jnp.float32))  # head-reduction acc

    # Megacore: batch axis parallel; query-tile axis must stay sequential per
    # core when the KV cache is used (qi == 0 must precede qi > 0 per batch).
    dim_sem = ("parallel",
               "arbitrary" if use_kv_cache else "parallel",
               "arbitrary")
    compiler_params = pltpu.CompilerParams(
        dimension_semantics=dim_sem, vmem_limit_bytes=vmem_limit)

    cost = pl.CostEstimate(
        flops=int(B * (16 * N * C * C + 8 * N * N * C)),
        transcendentals=int(2 * B * H * N * N),
        bytes_accessed=int(2 * B * N * C * 4 + 8 * C * C * itemsize))

    out = pl.pallas_call(
        kernel,
        out_shape=jax.ShapeDtypeStruct((B, N, C), jnp.float32),
        grid_spec=pltpu.PrefetchScalarGridSpec(
            num_scalar_prefetch=0,
            grid=(B, NQ, HB),
            in_specs=[
                pl.BlockSpec((1, N, C), lambda b, qi, hb: (b, 0, 0)),            # x (K/V; Q sliced)
                pl.BlockSpec((1, C, Ht * 2 * D), lambda b, qi, hb: (hb, 0, 0)),  # fused Wq
                pl.BlockSpec((1, C, Ht * 4 * D), lambda b, qi, hb: (hb, 0, 0)),  # fused Wk|Wv
                pl.BlockSpec((1, Ht * 2 * D, C), lambda b, qi, hb: (hb, 0, 0)),  # folded W_proj
                pl.BlockSpec((1, C), lambda b, qi, hb: (0, 0)),                  # folded bias
            ],
            out_specs=pl.BlockSpec((1, tq, C), lambda b, qi, hb: (b, qi, 0)),
            scratch_shapes=scratch_shapes,
        ),
        compiler_params=compiler_params,
        cost_estimate=cost,
    )(x_in, wq_blk, wkv_blk, wp_blk, b_eff)

    # compute_std_attn is False in the module -> second output is None.
    return out, None


def _reference(x, params, *, num_heads, layer_idx=1):
    """Pure-JAX reference mirroring the PyTorch forward exactly (f32)."""
    B, N, C = x.shape
    H = num_heads
    D = C // H
    scale = D ** (-0.5)
    lambda_param = params["lambda_param"]
    lambda_init = 0.8 - 0.6 * math.exp(-0.3 * (layer_idx - 1))

    q = (x @ params["wq"]).reshape(B, N, H, 2 * D).transpose(0, 2, 1, 3)
    k = (x @ params["wk"]).reshape(B, N, H, 2 * D).transpose(0, 2, 1, 3)
    v = (x @ params["wv"]).reshape(B, N, H, 2 * D).transpose(0, 2, 1, 3)
    q1, q2 = q[..., :D], q[..., D:]
    k1, k2 = k[..., :D], k[..., D:]
    a1 = jax.nn.softmax(jnp.einsum("bhnd,bhmd->bhnm", q1, k1) * scale, axis=-1)
    a2 = jax.nn.softmax(jnp.einsum("bhnd,bhmd->bhnm", q2, k2) * scale, axis=-1)
    o = jnp.einsum("bhnm,bhmd->bhnd", a1 - lambda_param * a2, v)   # (B,H,N,2D)
    mu = jnp.mean(o, axis=-1, keepdims=True)
    var = jnp.mean((o - mu) ** 2, axis=-1, keepdims=True)
    o_n = (o - mu) / jnp.sqrt(var + 1e-5)
    o_n = o_n * params["ln_gamma"] + params["ln_beta"]
    o_s = o_n * (1.0 - lambda_init)
    cat = o_s.transpose(0, 2, 1, 3).reshape(B, N, 2 * C)
    return cat @ params["w_proj"] + params["b_proj"]


if __name__ == "__main__":
    # Small shapes consistent with the module: embed_dim=32, num_heads=4 -> D=8.
    B, N, C, H = 2, 16, 32, 4
    key = jax.random.PRNGKey(0)
    k0, k1, k2, k3, k4, k5 = jax.random.split(key, 6)

    x = jax.random.normal(k0, (B, N, C), dtype=jnp.float32)

    params = {
        # Linear(C -> 2C), no bias; stored as (in, out) so y = x @ W.
        "wq": jax.random.normal(k1, (C, 2 * C), dtype=jnp.float32) * 0.05,
        "wk": jax.random.normal(k2, (C, 2 * C), dtype=jnp.float32) * 0.05,
        "wv": jax.random.normal(k3, (C, 2 * C), dtype=jnp.float32) * 0.05,
        # lambda parameter (init 1.0 in the module).
        "lambda_param": 1.0,
        # LayerNorm(2D) default affine params.
        "ln_gamma": jnp.ones((2 * (C // H),), dtype=jnp.float32),
        "ln_beta": jnp.zeros((2 * (C // H),), dtype=jnp.float32),
        # Output projection Linear(2C -> C), stored as (in, out), plus bias.
        "w_proj": jax.random.normal(k4, (2 * C, C), dtype=jnp.float32) * 0.05,
        "b_proj": jax.random.normal(k5, (C,), dtype=jnp.float32) * 0.05,
    }

    ref = _reference(x, params, num_heads=H, layer_idx=1)

    # 1) f32 path, all heads fused, single query tile (default).
    out, attn_maybe = multi_head_differential_attention(
        x, params, num_heads=H, layer_idx=1)
    out = jax.block_until_ready(out)
    np.testing.assert_allclose(np.asarray(out), np.asarray(ref),
                               rtol=2e-4, atol=2e-4)
    assert attn_maybe is None  # compute_std_attn = False

    # 2) f32 path exercising query tiling + the persistent KV-projection cache.
    out_qt, _ = multi_head_differential_attention(
        x, params, num_heads=H, layer_idx=1, q_tile=8)
    out_qt = jax.block_until_ready(out_qt)
    np.testing.assert_allclose(np.asarray(out_qt), np.asarray(ref),
                               rtol=2e-4, atol=2e-4)

    # 3) f32 path exercising query tiling + head-block reduction accumulator.
    out2, _ = multi_head_differential_attention(
        x, params, num_heads=H, layer_idx=1, heads_per_block=2, q_tile=8)
    out2 = jax.block_until_ready(out2)
    np.testing.assert_allclose(np.asarray(out2), np.asarray(ref),
                               rtol=2e-4, atol=2e-4)

    # 4) bf16 MXU-input path (v5e/v6e/v7x MXUs are bf16-native); all softmax /
    #    diff / LayerNorm statistics and accumulation stay in f32.
    out3, _ = multi_head_differential_attention(
        x, params, num_heads=H, layer_idx=1, mxu_dtype=jnp.bfloat16)
    out3 = jax.block_until_ready(out3)
    np.testing.assert_allclose(np.asarray(out3), np.asarray(ref),
                               rtol=1e-1, atol=5e-2)

    print("KERNEL_OK")
</pallas_src>

<mosaic_0001>
module attributes {stable_mosaic.version = 11 : i64} {
  func.func @_diff_attn_kernel(%arg0: i32, %arg1: i32, %arg2: i32, %arg3: memref<1x16x32xf32, #tpu.memory_space<vmem>>, %arg4: memref<1x32x64xf32, #tpu.memory_space<vmem>>, %arg5: memref<1x32x128xf32, #tpu.memory_space<vmem>>, %arg6: memref<1x64x32xf32, #tpu.memory_space<vmem>>, %arg7: memref<1x32xf32, #tpu.memory_space<vmem>>, %arg8: memref<1x16x32xf32, #tpu.memory_space<vmem>>, %arg9: memref<16x64xf32, #tpu.memory_space<vmem>>, %arg10: memref<16x128xf32, #tpu.memory_space<vmem>>) attributes {dimension_semantics = [#tpu.dimension_semantics<parallel>, #tpu.dimension_semantics<parallel>, #tpu.dimension_semantics<arbitrary>], iteration_bounds = array<i64: 2, 1, 1>, scalar_prefetch = 0 : i64, scratch_operands = 2 : i64, tpu.core_type = #tpu.core_type<tc>, window_params = [{transform_indices = @transform_0, window_bounds = array<i64: 1, 16, 32>}, {transform_indices = @transform_1, window_bounds = array<i64: 1, 32, 64>}, {transform_indices = @transform_2, window_bounds = array<i64: 1, 32, 128>}, {transform_indices = @transform_3, window_bounds = array<i64: 1, 64, 32>}, {pipeline_mode = #tpu.pipeline_mode<synchronous>, transform_indices = @transform_4, window_bounds = array<i64: 1, 32>}, {transform_indices = @transform_5, window_bounds = array<i64: 1, 16, 32>}]} {
    %c0 = arith.constant 0 : index
    %c0_0 = arith.constant 0 : index
    %c0_1 = arith.constant 0 : index
    %0 = vector.load %arg3[%c0, %c0_0, %c0_1] : memref<1x16x32xf32, #tpu.memory_space<vmem>>, vector<1x16x32xf32>
    %1 = vector.shape_cast %0 : vector<1x16x32xf32> to vector<16x32xf32>
    %c0_2 = arith.constant 0 : index
    %c0_3 = arith.constant 0 : index
    %c0_4 = arith.constant 0 : index
    %2 = vector.load %arg3[%c0_2, %c0_3, %c0_4] : memref<1x16x32xf32, #tpu.memory_space<vmem>>, vector<1x16x32xf32>
    %3 = vector.shape_cast %2 : vector<1x16x32xf32> to vector<16x32xf32>
    %c0_5 = arith.constant 0 : index
    %c0_6 = arith.constant 0 : index
    %c0_7 = arith.constant 0 : index
    %4 = vector.load %arg5[%c0_5, %c0_6, %c0_7] : memref<1x32x128xf32, #tpu.memory_space<vmem>>, vector<1x32x128xf32>
    %5 = vector.shape_cast %4 : vector<1x32x128xf32> to vector<32x128xf32>
    %cst = arith.constant dense<0.000000e+00> : vector<16x128xf32>
    %6 = tpu.matmul %3, %5, %cst {dimension_numbers = #tpu.dot_dimension_numbers<[1], [0], [0], [1], [0, 0, 1, 1], [], []>} : vector<16x32xf32>, vector<32x128xf32>, vector<16x128xf32> -> vector<16x128xf32>
    %c0_8 = arith.constant 0 : index
    %c0_9 = arith.constant 0 : index
    %7 = vector.load %arg10[%c0_8, %c0_9] : memref<16x128xf32, #tpu.memory_space<vmem>>, vector<16x128xf32>
    tpu.vector_store %arg10[%c0_8, %c0_9], %6 {strides = array<i32>} : memref<16x128xf32, #tpu.memory_space<vmem>>, vector<16x128xf32>,
    %c0_10 = arith.constant 0 : index
    %c0_11 = arith.constant 0 : index
    %c0_12 = arith.constant 0 : index
    %8 = vector.load %arg4[%c0_10, %c0_11, %c0_12] : memref<1x32x64xf32, #tpu.memory_space<vmem>>, vector<1x32x64xf32>
    %9 = vector.shape_cast %8 : vector<1x32x64xf32> to vector<32x64xf32>
    %cst_13 = arith.constant dense<0.000000e+00> : vector<16x64xf32>
    %10 = tpu.matmul %1, %9, %cst_13 {dimension_numbers = #tpu.dot_dimension_numbers<[1], [0], [0], [1], [0, 0, 1, 1], [], []>} : vector<16x32xf32>, vector<32x64xf32>, vector<16x64xf32> -> vector<16x64xf32>
    %11 = vector.extract_strided_slice %10 {offsets = [0, 0], sizes = [16, 8], strides = [1, 1]} : vector<16x64xf32> to vector<16x8xf32>
    %12 = vector.extract_strided_slice %10 {offsets = [0, 8], sizes = [16, 8], strides = [1, 1]} : vector<16x64xf32> to vector<16x8xf32>
    %c0_14 = arith.constant 0 : index
    %c0_15 = arith.constant 0 : index
    %13 = vector.load %arg10[%c0_14, %c0_15] : memref<16x128xf32, #tpu.memory_space<vmem>>, vector<16x8xf32>
    %c0_16 = arith.constant 0 : index
    %c8 = arith.constant 8 : index
    %14 = vector.load %arg10[%c0_16, %c8] : memref<16x128xf32, #tpu.memory_space<vmem>>, vector<16x8xf32>
    %c0_17 = arith.constant 0 : index
    %c16 = arith.constant 16 : index
    %15 = vector.load %arg10[%c0_17, %c16] : memref<16x128xf32, #tpu.memory_space<vmem>>, vector<16x16xf32>
    %cst_18 = arith.constant dense<0.000000e+00> : vector<16x16xf32>
    %16 = tpu.matmul %11, %13, %cst_18 {dimension_numbers = #tpu.dot_dimension_numbers<[1], [1], [0], [0], [0, 0, 1, 0], [], []>} : vector<16x8xf32>, vector<16x8xf32>, vector<16x16xf32> -> vector<16x16xf32>
    %cst_19 = arith.constant 0.353553385 : f32
    %17 = vector.broadcast %cst_19 : f32 to vector<16x16xf32>
    %18 = arith.mulf %16, %17 : vector<16x16xf32>
    %cst_20 = arith.constant dense<0.000000e+00> : vector<16x16xf32>
    %19 = tpu.matmul %12, %14, %cst_20 {dimension_numbers = #tpu.dot_dimension_numbers<[1], [1], [0], [0], [0, 0, 1, 0], [], []>} : vector<16x8xf32>, vector<16x8xf32>, vector<16x16xf32> -> vector<16x16xf32>
    %cst_21 = arith.constant 0.353553385 : f32
    %20 = vector.broadcast %cst_21 : f32 to vector<16x16xf32>
    %21 = arith.mulf %19, %20 : vector<16x16xf32>
    %cst_22 = arith.constant dense<0xFF800000> : vector<16xf32>
    %22 = vector.multi_reduction <maximumf>, %18, %cst_22 [1] : vector<16x16xf32> to vector<16xf32>
    %23 = vector.shape_cast %22 : vector<16xf32> to vector<16x1xf32>
    %24 = vector.broadcast %23 : vector<16x1xf32> to vector<16x16xf32>
    %25 = arith.subf %18, %24 : vector<16x16xf32>
    %26 = math.exp %25 : vector<16x16xf32>
    %cst_23 = arith.constant dense<0.000000e+00> : vector<16xf32>
    %27 = vector.multi_reduction <add>, %26, %cst_23 [1] : vector<16x16xf32> to vector<16xf32>
    %28 = vector.shape_cast %27 : vector<16xf32> to vector<16x1xf32>
    %29 = tpu.reciprocal %28 {approx = true} : vector<16x1xf32> -> vector<16x1xf32>
    %30 = arith.mulf %28, %29 : vector<16x1xf32>
    %cst_24 = arith.constant 2.000000e+00 : f32
    %31 = vector.broadcast %cst_24 : f32 to vector<16x1xf32>
    %32 = arith.subf %31, %30 : vector<16x1xf32>
    %33 = arith.mulf %29, %32 : vector<16x1xf32>
    %34 = vector.broadcast %33 : vector<16x1xf32> to vector<16x16xf32>
    %35 = arith.mulf %26, %34 : vector<16x16xf32>
    %cst_25 = arith.constant dense<0xFF800000> : vector<16xf32>
    %36 = vector.multi_reduction <maximumf>, %21, %cst_25 [1] : vector<16x16xf32> to vector<16xf32>
    %37 = vector.shape_cast %36 : vector<16xf32> to vector<16x1xf32>
    %38 = vector.broadcast %37 : vector<16x1xf32> to vector<16x16xf32>
    %39 = arith.subf %21, %38 : vector<16x16xf32>
    %40 = math.exp %39 : vector<16x16xf32>
    %cst_26 = arith.constant dense<0.000000e+00> : vector<16xf32>
    %41 = vector.multi_reduction <add>, %40, %cst_26 [1] : vector<16x16xf32> to vector<16xf32>
    %42 = vector.shape_cast %41 : vector<16xf32> to vector<16x1xf32>
    %43 = tpu.reciprocal %42 {approx = true} : vector<16x1xf32> -> vector<16x1xf32>
    %44 = arith.mulf %42, %43 : vector<16x1xf32>
    %cst_27 = arith.constant 2.000000e+00 : f32
    %45 = vector.broadcast %cst_27 : f32 to vector<16x1xf32>
    %46 = arith.subf %45, %44 : vector<16x1xf32>
    %47 = arith.mulf %43, %46 : vector<16x1xf32>
    %48 = vector.broadcast %47 : vector<16x1xf32> to vector<16x16xf32>
    %49 = arith.mulf %40, %48 : vector<16x16xf32>
    %cst_28 = arith.constant 1.000000e+00 : f32
    %50 = vector.broadcast %cst_28 : f32 to vector<16x16xf32>
    %51 = arith.mulf %50, %49 : vector<16x16xf32>
    %52 = arith.subf %35, %51 : vector<16x16xf32>
    %cst_29 = arith.constant dense<0.000000e+00> : vector<16x16xf32>
    %53 = tpu.matmul %52, %15, %cst_29 {dimension_numbers = #tpu.dot_dimension_numbers<[1], [0], [0], [1], [0, 0, 1, 1], [], []>} : vector<16x16xf32>, vector<16x16xf32>, vector<16x16xf32> -> vector<16x16xf32>
    %cst_30 = arith.constant dense<0.000000e+00> : vector<16xf32>
    %54 = vector.multi_reduction <add>, %53, %cst_30 [1] : vector<16x16xf32> to vector<16xf32>
    %55 = vector.shape_cast %54 : vector<16xf32> to vector<16x1xf32>
    %cst_31 = arith.constant 1.600000e+01 : f32
    %56 = vector.broadcast %cst_31 : f32 to vector<16x1xf32>
    %57 = arith.divf %55, %56 : vector<16x1xf32>
    %58 = vector.broadcast %57 : vector<16x1xf32> to vector<16x16xf32>
    %59 = arith.subf %53, %58 : vector<16x16xf32>
    %60 = arith.mulf %59, %59 : vector<16x16xf32>
    %cst_32 = arith.constant dense<0.000000e+00> : vector<16xf32>
    %61 = vector.multi_reduction <add>, %60, %cst_32 [1] : vector<16x16xf32> to vector<16xf32>
    %62 = vector.shape_cast %61 : vector<16xf32> to vector<16x1xf32>
    %cst_33 = arith.constant 1.600000e+01 : f32
    %63 = vector.broadcast %cst_33 : f32 to vector<16x1xf32>
    %64 = arith.divf %62, %63 : vector<16x1xf32>
    %65 = vector.broadcast %57 : vector<16x1xf32> to vector<16x16xf32>
    %66 = arith.subf %53, %65 : vector<16x16xf32>
    %cst_34 = arith.constant 9.99999974E-6 : f32
    %67 = vector.broadcast %cst_34 : f32 to vector<16x1xf32>
    %68 = arith.addf %64, %67 : vector<16x1xf32>
    %69 = math.rsqrt %68 : vector<16x1xf32>
    %70 = vector.broadcast %69 : vector<16x1xf32> to vector<16x16xf32>
    %71 = arith.mulf %66, %70 : vector<16x16xf32>
    %c0_35 = arith.constant 0 : index
    %c0_36 = arith.constant 0 : index
    %72 = vector.load %arg9[%c0_35, %c0_36] : memref<16x64xf32, #tpu.memory_space<vmem>>, vector<16x16xf32>
    tpu.vector_store %arg9[%c0_35, %c0_36], %71 {strides = array<i32>} : memref<16x64xf32, #tpu.memory_space<vmem>>, vector<16x16xf32>,
    %73 = vector.extract_strided_slice %10 {offsets = [0, 16], sizes = [16, 8], strides = [1, 1]} : vector<16x64xf32> to vector<16x8xf32>
    %74 = vector.extract_strided_slice %10 {offsets = [0, 24], sizes = [16, 8], strides = [1, 1]} : vector<16x64xf32> to vector<16x8xf32>
    %c0_37 = arith.constant 0 : index
    %c32 = arith.constant 32 : index
    %75 = vector.load %arg10[%c0_37, %c32] : memref<16x128xf32, #tpu.memory_space<vmem>>, vector<16x8xf32>
    %c0_38 = arith.constant 0 : index
    %c40 = arith.constant 40 : index
    %76 = vector.load %arg10[%c0_38, %c40] : memref<16x128xf32, #tpu.memory_space<vmem>>, vector<16x8xf32>
    %c0_39 = arith.constant 0 : index
    %c48 = arith.constant 48 : index
    %77 = vector.load %arg10[%c0_39, %c48] : memref<16x128xf32, #tpu.memory_space<vmem>>, vector<16x16xf32>
    %cst_40 = arith.constant dense<0.000000e+00> : vector<16x16xf32>
    %78 = tpu.matmul %73, %75, %cst_40 {dimension_numbers = #tpu.dot_dimension_numbers<[1], [1], [0], [0], [0, 0, 1, 0], [], []>} : vector<16x8xf32>, vector<16x8xf32>, vector<16x16xf32> -> vector<16x16xf32>
    %cst_41 = arith.constant 0.353553385 : f32
    %79 = vector.broadcast %cst_41 : f32 to vector<16x16xf32>
    %80 = arith.mulf %78, %79 : vector<16x16xf32>
    %cst_42 = arith.constant dense<0.000000e+00> : vector<16x16xf32>
    %81 = tpu.matmul %74, %76, %cst_42 {dimension_numbers = #tpu.dot_dimension_numbers<[1], [1], [0], [0], [0, 0, 1, 0], [], []>} : vector<16x8xf32>, vector<16x8xf32>, vector<16x16xf32> -> vector<16x16xf32>
    %cst_43 = arith.constant 0.353553385 : f32
    %82 = vector.broadcast %cst_43 : f32 to vector<16x16xf32>
    %83 = arith.mulf %81, %82 : vector<16x16xf32>
    %cst_44 = arith.constant dense<0xFF800000> : vector<16xf32>
    %84 = vector.multi_reduction <maximumf>, %80, %cst_44 [1] : vector<16x16xf32> to vector<16xf32>
    %85 = vector.shape_cast %84 : vector<16xf32> to vector<16x1xf32>
    %86 = vector.broadcast %85 : vector<16x1xf32> to vector<16x16xf32>
    %87 = arith.subf %80, %86 : vector<16x16xf32>
    %88 = math.exp %87 : vector<16x16xf32>
    %cst_45 = arith.constant dense<0.000000e+00> : vector<16xf32>
    %89 = vector.multi_reduction <add>, %88, %cst_45 [1] : vector<16x16xf32> to vector<16xf32>
    %90 = vector.shape_cast %89 : vector<16xf32> to vector<16x1xf32>
    %91 = tpu.reciprocal %90 {approx = true} : vector<16x1xf32> -> vector<16x1xf32>
    %92 = arith.mulf %90, %91 : vector<16x1xf32>
    %cst_46 = arith.constant 2.000000e+00 : f32
    %93 = vector.broadcast %cst_46 : f32 to vector<16x1xf32>
    %94 = arith.subf %93, %92 : vector<16x1xf32>
    %95 = arith.mulf %91, %94 : vector<16x1xf32>
    %96 = vector.broadcast %95 : vector<16x1xf32> to vector<16x16xf32>
    %97 = arith.mulf %88, %96 : vector<16x16xf32>
    %cst_47 = arith.constant dense<0xFF800000> : vector<16xf32>
    %98 = vector.multi_reduction <maximumf>, %83, %cst_47 [1] : vector<16x16xf32> to vector<16xf32>
    %99 = vector.shape_cast %98 : vector<16xf32> to vector<16x1xf32>
    %100 = vector.broadcast %99 : vector<16x1xf32> to vector<16x16xf32>
    %101 = arith.subf %83, %100 : vector<16x16xf32>
    %102 = math.exp %101 : vector<16x16xf32>
    %cst_48 = arith.constant dense<0.000000e+00> : vector<16xf32>
    %103 = vector.multi_reduction <add>, %102, %cst_48 [1] : vector<16x16xf32> to vector<16xf32>
    %104 = vector.shape_cast %103 : vector<16xf32> to vector<16x1xf32>
    %105 = tpu.reciprocal %104 {approx = true} : vector<16x1xf32> -> vector<16x1xf32>
    %106 = arith.mulf %104, %105 : vector<16x1xf32>
    %cst_49 = arith.constant 2.000000e+00 : f32
    %107 = vector.broadcast %cst_49 : f32 to vector<16x1xf32>
    %108 = arith.subf %107, %106 : vector<16x1xf32>
    %109 = arith.mulf %105, %108 : vector<16x1xf32>
    %110 = vector.broadcast %109 : vector<16x1xf32> to vector<16x16xf32>
    %111 = arith.mulf %102, %110 : vector<16x16xf32>
    %cst_50 = arith.constant 1.000000e+00 : f32
    %112 = vector.broadcast %cst_50 : f32 to vector<16x16xf32>
    %113 = arith.mulf %112, %111 : vector<16x16xf32>
    %114 = arith.subf %97, %113 : vector<16x16xf32>
    %cst_51 = arith.constant dense<0.000000e+00> : vector<16x16xf32>
    %115 = tpu.matmul %114, %77, %cst_51 {dimension_numbers = #tpu.dot_dimension_numbers<[1], [0], [0], [1], [0, 0, 1, 1], [], []>} : vector<16x16xf32>, vector<16x16xf32>, vector<16x16xf32> -> vector<16x16xf32>
    %cst_52 = arith.constant dense<0.000000e+00> : vector<16xf32>
    %116 = vector.multi_reduction <add>, %115, %cst_52 [1] : vector<16x16xf32> to vector<16xf32>
    %117 = vector.shape_cast %116 : vector<16xf32> to vector<16x1xf32>
    %cst_53 = arith.constant 1.600000e+01 : f32
    %118 = vector.broadcast %cst_53 : f32 to vector<16x1xf32>
    %119 = arith.divf %117, %118 : vector<16x1xf32>
    %120 = vector.broadcast %119 : vector<16x1xf32> to vector<16x16xf32>
    %121 = arith.subf %115, %120 : vector<16x16xf32>
    %122 = arith.mulf %121, %121 : vector<16x16xf32>
    %cst_54 = arith.constant dense<0.000000e+00> : vector<16xf32>
    %123 = vector.multi_reduction <add>, %122, %cst_54 [1] : vector<16x16xf32> to vector<16xf32>
    %124 = vector.shape_cast %123 : vector<16xf32> to vector<16x1xf32>
    %cst_55 = arith.constant 1.600000e+01 : f32
    %125 = vector.broadcast %cst_55 : f32 to vector<16x1xf32>
    %126 = arith.divf %124, %125 : vector<16x1xf32>
    %127 = vector.broadcast %119 : vector<16x1xf32> to vector<16x16xf32>
    %128 = arith.subf %115, %127 : vector<16x16xf32>
    %cst_56 = arith.constant 9.99999974E-6 : f32
    %129 = vector.broadcast %cst_56 : f32 to vector<16x1xf32>
    %130 = arith.addf %126, %129 : vector<16x1xf32>
    %131 = math.rsqrt %130 : vector<16x1xf32>
    %132 = vector.broadcast %131 : vector<16x1xf32> to vector<16x16xf32>
    %133 = arith.mulf %128, %132 : vector<16x16xf32>
    %c0_57 = arith.constant 0 : index
    %c16_58 = arith.constant 16 : index
    %134 = vector.load %arg9[%c0_57, %c16_58] : memref<16x64xf32, #tpu.memory_space<vmem>>, vector<16x16xf32>
    tpu.vector_store %arg9[%c0_57, %c16_58], %133 {strides = array<i32>} : memref<16x64xf32, #tpu.memory_space<vmem>>, vector<16x16xf32>,
    %135 = vector.extract_strided_slice %10 {offsets = [0, 32], sizes = [16, 8], strides = [1, 1]} : vector<16x64xf32> to vector<16x8xf32>
    %136 = vector.extract_strided_slice %10 {offsets = [0, 40], sizes = [16, 8], strides = [1, 1]} : vector<16x64xf32> to vector<16x8xf32>
    %c0_59 = arith.constant 0 : index
    %c64 = arith.constant 64 : index
    %137 = vector.load %arg10[%c0_59, %c64] : memref<16x128xf32, #tpu.memory_space<vmem>>, vector<16x8xf32>
    %c0_60 = arith.constant 0 : index
    %c72 = arith.constant 72 : index
    %138 = vector.load %arg10[%c0_60, %c72] : memref<16x128xf32, #tpu.memory_space<vmem>>, vector<16x8xf32>
    %c0_61 = arith.constant 0 : index
    %c80 = arith.constant 80 : index
    %139 = vector.load %arg10[%c0_61, %c80] : memref<16x128xf32, #tpu.memory_space<vmem>>, vector<16x16xf32>
    %cst_62 = arith.constant dense<0.000000e+00> : vector<16x16xf32>
    %140 = tpu.matmul %135, %137, %cst_62 {dimension_numbers = #tpu.dot_dimension_numbers<[1], [1], [0], [0], [0, 0, 1, 0], [], []>} : vector<16x8xf32>, vector<16x8xf32>, vector<16x16xf32> -> vector<16x16xf32>
    %cst_63 = arith.constant 0.353553385 : f32
    %141 = vector.broadcast %cst_63 : f32 to vector<16x16xf32>
    %142 = arith.mulf %140, %141 : vector<16x16xf32>
    %cst_64 = arith.constant dense<0.000000e+00> : vector<16x16xf32>
    %143 = tpu.matmul %136, %138, %cst_64 {dimension_numbers = #tpu.dot_dimension_numbers<[1], [1], [0], [0], [0, 0, 1, 0], [], []>} : vector<16x8xf32>, vector<16x8xf32>, vector<16x16xf32> -> vector<16x16xf32>
    %cst_65 = arith.constant 0.353553385 : f32
    %144 = vector.broadcast %cst_65 : f32 to vector<16x16xf32>
    %145 = arith.mulf %143, %144 : vector<16x16xf32>
    %cst_66 = arith.constant dense<0xFF800000> : vector<16xf32>
    %146 = vector.multi_reduction <maximumf>, %142, %cst_66 [1] : vector<16x16xf32> to vector<16xf32>
    %147 = vector.shape_cast %146 : vector<16xf32> to vector<16x1xf32>
    %148 = vector.broadcast %147 : vector<16x1xf32> to vector<16x16xf32>
    %149 = arith.subf %142, %148 : vector<16x16xf32>
    %150 = math.exp %149 : vector<16x16xf32>
    %cst_67 = arith.constant dense<0.000000e+00> : vector<16xf32>
    %151 = vector.multi_reduction <add>, %150, %cst_67 [1] : vector<16x16xf32> to vector<16xf32>
    %152 = vector.shape_cast %151 : vector<16xf32> to vector<16x1xf32>
    %153 = tpu.reciprocal %152 {approx = true} : vector<16x1xf32> -> vector<16x1xf32>
    %154 = arith.mulf %152, %153 : vector<16x1xf32>
    %cst_68 = arith.constant 2.000000e+00 : f32
    %155 = vector.broadcast %cst_68 : f32 to vector<16x1xf32>
    %156 = arith.subf %155, %154 : vector<16x1xf32>
    %157 = arith.mulf %153, %156 : vector<16x1xf32>
    %158 = vector.broadcast %157 : vector<16x1xf32> to vector<16x16xf32>
    %159 = arith.mulf %150, %158 : vector<16x16xf32>
    %cst_69 = arith.constant dense<0xFF800000> : vector<16xf32>
    %160 = vector.multi_reduction <maximumf>, %145, %cst_69 [1] : vector<16x16xf32> to vector<16xf32>
    %161 = vector.shape_cast %160 : vector<16xf32> to vector<16x1xf32>
    %162 = vector.broadcast %161 : vector<16x1xf32> to vector<16x16xf32>
    %163 = arith.subf %145, %162 : vector<16x16xf32>
    %164 = math.exp %163 : vector<16x16xf32>
    %cst_70 = arith.constant dense<0.000000e+00> : vector<16xf32>
    %165 = vector.multi_reduction <add>, %164, %cst_70 [1] : vector<16x16xf32> to vector<16xf32>
    %166 = vector.shape_cast %165 : vector<16xf32> to vector<16x1xf32>
    %167 = tpu.reciprocal %166 {approx = true} : vector<16x1xf32> -> vector<16x1xf32>
    %168 = arith.mulf %166, %167 : vector<16x1xf32>
    %cst_71 = arith.constant 2.000000e+00 : f32
    %169 = vector.broadcast %cst_71 : f32 to vector<16x1xf32>
    %170 = arith.subf %169, %168 : vector<16x1xf32>
    %171 = arith.mulf %167, %170 : vector<16x1xf32>
    %172 = vector.broadcast %171 : vector<16x1xf32> to vector<16x16xf32>
    %173 = arith.mulf %164, %172 : vector<16x16xf32>
    %cst_72 = arith.constant 1.000000e+00 : f32
    %174 = vector.broadcast %cst_72 : f32 to vector<16x16xf32>
    %175 = arith.mulf %174, %173 : vector<16x16xf32>
    %176 = arith.subf %159, %175 : vector<16x16xf32>
    %cst_73 = arith.constant dense<0.000000e+00> : vector<16x16xf32>
    %177 = tpu.matmul %176, %139, %cst_73 {dimension_numbers = #tpu.dot_dimension_numbers<[1], [0], [0], [1], [0, 0, 1, 1], [], []>} : vector<16x16xf32>, vector<16x16xf32>, vector<16x16xf32> -> vector<16x16xf32>
    %cst_74 = arith.constant dense<0.000000e+00> : vector<16xf32>
    %178 = vector.multi_reduction <add>, %177, %cst_74 [1] : vector<16x16xf32> to vector<16xf32>
    %179 = vector.shape_cast %178 : vector<16xf32> to vector<16x1xf32>
    %cst_75 = arith.constant 1.600000e+01 : f32
    %180 = vector.broadcast %cst_75 : f32 to vector<16x1xf32>
    %181 = arith.divf %179, %180 : vector<16x1xf32>
    %182 = vector.broadcast %181 : vector<16x1xf32> to vector<16x16xf32>
    %183 = arith.subf %177, %182 : vector<16x16xf32>
    %184 = arith.mulf %183, %183 : vector<16x16xf32>
    %cst_76 = arith.constant dense<0.000000e+00> : vector<16xf32>
    %185 = vector.multi_reduction <add>, %184, %cst_76 [1] : vector<16x16xf32> to vector<16xf32>
    %186 = vector.shape_cast %185 : vector<16xf32> to vector<16x1xf32>
    %cst_77 = arith.constant 1.600000e+01 : f32
    %187 = vector.broadcast %cst_77 : f32 to vector<16x1xf32>
    %188 = arith.divf %186, %187 : vector<16x1xf32>
    %189 = vector.broadcast %181 : vector<16x1xf32> to vector<16x16xf32>
    %190 = arith.subf %177, %189 : vector<16x16xf32>
    %cst_78 = arith.constant 9.99999974E-6 : f32
    %191 = vector.broadcast %cst_78 : f32 to vector<16x1xf32>
    %192 = arith.addf %188, %191 : vector<16x1xf32>
    %193 = math.rsqrt %192 : vector<16x1xf32>
    %194 = vector.broadcast %193 : vector<16x1xf32> to vector<16x16xf32>
    %195 = arith.mulf %190, %194 : vector<16x16xf32>
    %c0_79 = arith.constant 0 : index
    %c32_80 = arith.constant 32 : index
    %196 = vector.load %arg9[%c0_79, %c32_80] : memref<16x64xf32, #tpu.memory_space<vmem>>, vector<16x16xf32>
    tpu.vector_store %arg9[%c0_79, %c32_80], %195 {strides = array<i32>} : memref<16x64xf32, #tpu.memory_space<vmem>>, vector<16x16xf32>,
    %197 = vector.extract_strided_slice %10 {offsets = [0, 48], sizes = [16, 8], strides = [1, 1]} : vector<16x64xf32> to vector<16x8xf32>
    %198 = vector.extract_strided_slice %10 {offsets = [0, 56], sizes = [16, 8], strides = [1, 1]} : vector<16x64xf32> to vector<16x8xf32>
    %c0_81 = arith.constant 0 : index
    %c96 = arith.constant 96 : index
    %199 = vector.load %arg10[%c0_81, %c96] : memref<16x128xf32, #tpu.memory_space<vmem>>, vector<16x8xf32>
    %c0_82 = arith.constant 0 : index
    %c104 = arith.constant 104 : index
    %200 = vector.load %arg10[%c0_82, %c104] : memref<16x128xf32, #tpu.memory_space<vmem>>, vector<16x8xf32>
    %c0_83 = arith.constant 0 : index
    %c112 = arith.constant 112 : index
    %201 = vector.load %arg10[%c0_83, %c112] : memref<16x128xf32, #tpu.memory_space<vmem>>, vector<16x16xf32>
    %cst_84 = arith.constant dense<0.000000e+00> : vector<16x16xf32>
    %202 = tpu.matmul %197, %199, %cst_84 {dimension_numbers = #tpu.dot_dimension_numbers<[1], [1], [0], [0], [0, 0, 1, 0], [], []>} : vector<16x8xf32>, vector<16x8xf32>, vector<16x16xf32> -> vector<16x16xf32>
    %cst_85 = arith.constant 0.353553385 : f32
    %203 = vector.broadcast %cst_85 : f32 to vector<16x16xf32>
    %204 = arith.mulf %202, %203 : vector<16x16xf32>
    %cst_86 = arith.constant dense<0.000000e+00> : vector<16x16xf32>
    %205 = tpu.matmul %198, %200, %cst_86 {dimension_numbers = #tpu.dot_dimension_numbers<[1], [1], [0], [0], [0, 0, 1, 0], [], []>} : vector<16x8xf32>, vector<16x8xf32>, vector<16x16xf32> -> vector<16x16xf32>
    %cst_87 = arith.constant 0.353553385 : f32
    %206 = vector.broadcast %cst_87 : f32 to vector<16x16xf32>
    %207 = arith.mulf %205, %206 : vector<16x16xf32>
    %cst_88 = arith.constant dense<0xFF800000> : vector<16xf32>
    %208 = vector.multi_reduction <maximumf>, %204, %cst_88 [1] : vector<16x16xf32> to vector<16xf32>
    %209 = vector.shape_cast %208 : vector<16xf32> to vector<16x1xf32>
    %210 = vector.broadcast %209 : vector<16x1xf32> to vector<16x16xf32>
    %211 = arith.subf %204, %210 : vector<16x16xf32>
    %212 = math.exp %211 : vector<16x16xf32>
    %cst_89 = arith.constant dense<0.000000e+00> : vector<16xf32>
    %213 = vector.multi_reduction <add>, %212, %cst_89 [1] : vector<16x16xf32> to vector<16xf32>
    %214 = vector.shape_cast %213 : vector<16xf32> to vector<16x1xf32>
    %215 = tpu.reciprocal %214 {approx = true} : vector<16x1xf32> -> vector<16x1xf32>
    %216 = arith.mulf %214, %215 : vector<16x1xf32>
    %cst_90 = arith.constant 2.000000e+00 : f32
    %217 = vector.broadcast %cst_90 : f32 to vector<16x1xf32>
    %218 = arith.subf %217, %216 : vector<16x1xf32>
    %219 = arith.mulf %215, %218 : vector<16x1xf32>
    %220 = vector.broadcast %219 : vector<16x1xf32> to vector<16x16xf32>
    %221 = arith.mulf %212, %220 : vector<16x16xf32>
    %cst_91 = arith.constant dense<0xFF800000> : vector<16xf32>
    %222 = vector.multi_reduction <maximumf>, %207, %cst_91 [1] : vector<16x16xf32> to vector<16xf32>
    %223 = vector.shape_cast %222 : vector<16xf32> to vector<16x1xf32>
    %224 = vector.broadcast %223 : vector<16x1xf32> to vector<16x16xf32>
    %225 = arith.subf %207, %224 : vector<16x16xf32>
    %226 = math.exp %225 : vector<16x16xf32>
    %cst_92 = arith.constant dense<0.000000e+00> : vector<16xf32>
    %227 = vector.multi_reduction <add>, %226, %cst_92 [1] : vector<16x16xf32> to vector<16xf32>
    %228 = vector.shape_cast %227 : vector<16xf32> to vector<16x1xf32>
    %229 = tpu.reciprocal %228 {approx = true} : vector<16x1xf32> -> vector<16x1xf32>
    %230 = arith.mulf %228, %229 : vector<16x1xf32>
    %cst_93 = arith.constant 2.000000e+00 : f32
    %231 = vector.broadcast %cst_93 : f32 to vector<16x1xf32>
    %232 = arith.subf %231, %230 : vector<16x1xf32>
    %233 = arith.mulf %229, %232 : vector<16x1xf32>
    %234 = vector.broadcast %233 : vector<16x1xf32> to vector<16x16xf32>
    %235 = arith.mulf %226, %234 : vector<16x16xf32>
    %cst_94 = arith.constant 1.000000e+00 : f32
    %236 = vector.broadcast %cst_94 : f32 to vector<16x16xf32>
    %237 = arith.mulf %236, %235 : vector<16x16xf32>
    %238 = arith.subf %221, %237 : vector<16x16xf32>
    %cst_95 = arith.constant dense<0.000000e+00> : vector<16x16xf32>
    %239 = tpu.matmul %238, %201, %cst_95 {dimension_numbers = #tpu.dot_dimension_numbers<[1], [0], [0], [1], [0, 0, 1, 1], [], []>} : vector<16x16xf32>, vector<16x16xf32>, vector<16x16xf32> -> vector<16x16xf32>
    %cst_96 = arith.constant dense<0.000000e+00> : vector<16xf32>
    %240 = vector.multi_reduction <add>, %239, %cst_96 [1] : vector<16x16xf32> to vector<16xf32>
    %241 = vector.shape_cast %240 : vector<16xf32> to vector<16x1xf32>
    %cst_97 = arith.constant 1.600000e+01 : f32
    %242 = vector.broadcast %cst_97 : f32 to vector<16x1xf32>
    %243 = arith.divf %241, %242 : vector<16x1xf32>
    %244 = vector.broadcast %243 : vector<16x1xf32> to vector<16x16xf32>
    %245 = arith.subf %239, %244 : vector<16x16xf32>
    %246 = arith.mulf %245, %245 : vector<16x16xf32>
    %cst_98 = arith.constant dense<0.000000e+00> : vector<16xf32>
    %247 = vector.multi_reduction <add>, %246, %cst_98 [1] : vector<16x16xf32> to vector<16xf32>
    %248 = vector.shape_cast %247 : vector<16xf32> to vector<16x1xf32>
    %cst_99 = arith.constant 1.600000e+01 : f32
    %249 = vector.broadcast %cst_99 : f32 to vector<16x1xf32>
    %250 = arith.divf %248, %249 : vector<16x1xf32>
    %251 = vector.broadcast %243 : vector<16x1xf32> to vector<16x16xf32>
    %252 = arith.subf %239, %251 : vector<16x16xf32>
    %cst_100 = arith.constant 9.99999974E-6 : f32
    %253 = vector.broadcast %cst_100 : f32 to vector<16x1xf32>
    %254 = arith.addf %250, %253 : vector<16x1xf32>
    %255 = math.rsqrt %254 : vector<16x1xf32>
    %256 = vector.broadcast %255 : vector<16x1xf32> to vector<16x16xf32>
    %257 = arith.mulf %252, %256 : vector<16x16xf32>
    %c0_101 = arith.constant 0 : index
    %c48_102 = arith.constant 48 : index
    %258 = vector.load %arg9[%c0_101, %c48_102] : memref<16x64xf32, #tpu.memory_space<vmem>>, vector<16x16xf32>
    tpu.vector_store %arg9[%c0_101, %c48_102], %257 {strides = array<i32>} : memref<16x64xf32, #tpu.memory_space<vmem>>, vector<16x16xf32>,
    %c0_103 = arith.constant 0 : index
    %c0_104 = arith.constant 0 : index
    %259 = vector.load %arg9[%c0_103, %c0_104] : memref<16x64xf32, #tpu.memory_space<vmem>>, vector<16x64xf32>
    %c0_105 = arith.constant 0 : index
    %c0_106 = arith.constant 0 : index
    %c0_107 = arith.constant 0 : index
    %260 = vector.load %arg6[%c0_105, %c0_106, %c0_107] : memref<1x64x32xf32, #tpu.memory_space<vmem>>, vector<1x64x32xf32>
    %261 = vector.shape_cast %260 : vector<1x64x32xf32> to vector<64x32xf32>
    %cst_108 = arith.constant dense<0.000000e+00> : vector<16x32xf32>
    %262 = tpu.matmul %259, %261, %cst_108 {dimension_numbers = #tpu.dot_dimension_numbers<[1], [0], [0], [1], [0, 0, 1, 1], [], []>} : vector<16x64xf32>, vector<64x32xf32>, vector<16x32xf32> -> vector<16x32xf32>
    %c0_109 = arith.constant 0 : index
    %c0_110 = arith.constant 0 : index
    %263 = vector.load %arg7[%c0_109, %c0_110] : memref<1x32xf32, #tpu.memory_space<vmem>>, vector<1x32xf32>
    %264 = vector.broadcast %263 : vector<1x32xf32> to vector<16x32xf32>
    %265 = arith.addf %262, %264 : vector<16x32xf32>
    %c0_111 = arith.constant 0 : index
    %c0_112 = arith.constant 0 : index
    %c0_113 = arith.constant 0 : index
    %266 = vector.load %arg8[%c0_111, %c0_112, %c0_113] : memref<1x16x32xf32, #tpu.memory_space<vmem>>, vector<1x16x32xf32>
    %267 = vector.shape_cast %266 : vector<1x16x32xf32> to vector<16x32xf32>
    %268 = vector.shape_cast %265 : vector<16x32xf32> to vector<1x16x32xf32>
    tpu.vector_store %arg8[%c0_111, %c0_112, %c0_113], %268 {strides = array<i32>} : memref<1x16x32xf32, #tpu.memory_space<vmem>>, vector<1x16x32xf32>,
    return
  }
  func.func @transform_0(%arg0: i32, %arg1: i32, %arg2: i32) -> (i32, i32, i32) {
    %c0_i32 = arith.constant 0 : i32
    %c0_i32_0 = arith.constant 0 : i32
    %c0_i32_1 = arith.constant 0 : i32
    return %arg0, %c0_i32, %c0_i32_0 : i32, i32, i32
  }
  func.func @transform_1(%arg0: i32, %arg1: i32, %arg2: i32) -> (i32, i32, i32) {
    %c0_i32 = arith.constant 0 : i32
    %c0_i32_0 = arith.constant 0 : i32
    %c0_i32_1 = arith.constant 0 : i32
    return %arg2, %c0_i32, %c0_i32_0 : i32, i32, i32
  }
  func.func @transform_2(%arg0: i32, %arg1: i32, %arg2: i32) -> (i32, i32, i32) {
    %c0_i32 = arith.constant 0 : i32
    %c0_i32_0 = arith.constant 0 : i32
    %c0_i32_1 = arith.constant 0 : i32
    return %arg2, %c0_i32, %c0_i32_0 : i32, i32, i32
  }
  func.func @transform_3(%arg0: i32, %arg1: i32, %arg2: i32) -> (i32, i32, i32) {
    %c0_i32 = arith.constant 0 : i32
    %c0_i32_0 = arith.constant 0 : i32
    %c0_i32_1 = arith.constant 0 : i32
    return %arg2, %c0_i32, %c0_i32_0 : i32, i32, i32
  }
  func.func @transform_4(%arg0: i32, %arg1: i32, %arg2: i32) -> (i32, i32) {
    %c0_i32 = arith.constant 0 : i32
    %c0_i32_0 = arith.constant 0 : i32
    %c0_i32_1 = arith.constant 0 : i32
    return %c0_i32, %c0_i32_0 : i32, i32
  }
  func.func @transform_5(%arg0: i32, %arg1: i32, %arg2: i32) -> (i32, i32, i32) {
    %c0_i32 = arith.constant 0 : i32
    %c0_i32_0 = arith.constant 0 : i32
    return %arg0, %arg1, %c0_i32 : i32, i32, i32
  }
}

</mosaic_0001>

<llo_original>
// kernel: tpu_custom_call.1
$region0: #{tpu_custom_call.1}
  #allocation0 [shape = 'u32[]', space=smem, size = 0x4, offset = 0x4, fixed_abs, tag = 'smem constant byte address 0x4 - core index']
  #allocation1 [shape = 'u32[72,128]{1,0:T(1,128)}', space=vmem, size = 0x9000, scoped, tag = 'internal scratch']
  #allocation2 [shape = 'f32[16,64]{1,0:T(8,128)}', space=vmem, size = 0x2000, scoped, tag = 'scratch operand']
  #allocation3 [shape = 'f32[16,128]{1,0:T(8,128)}', space=vmem, size = 0x2000, scoped, tag = 'scratch operand']
  %s0 = inlined_call_operand.vmem [shape: f32[2,16,32], index: 0, kind: input, shape index: {}]
  %s1 = inlined_call_operand.vmem [shape: f32[1,32,64], index: 1, kind: input, shape index: {}]
  %s2 = inlined_call_operand.vmem [shape: f32[1,32,128], index: 2, kind: input, shape index: {}]
  %s3 = inlined_call_operand.vmem [shape: f32[1,64,32], index: 3, kind: input, shape index: {}]
  %s4 = inlined_call_operand.vmem [shape: f32[1,32], index: 4, kind: input, shape index: {}]
  %s5 = inlined_call_operand.hbm [shape: f32[2,16,32], index: 5, kind: output, shape index: {}]
  %s6 = sld [smem:[#allocation0]]
  $region53: #{tpu_custom_call.1} parent=0
    _
  %s8 = ssub.s32 1, %s6
  %s9 = scalar_select 0, %s8, %s6
  $region1: #{tpu_custom_call.1} parent=0
    #allocation4 [shape = 'u8[16384]{0}', space=vmem, size = 0x4000, scoped, tag = 'output window, operand 0']
    #allocation5 [shape = 's32[2]{0}', space=sflag, size = 0x8, scoped, tag = 'scoped memory for tpu_custom_call.1']
    %10 = vsyncpa [#allocation5], 0
    %s11 = scalar_lea.sflag [#allocation5], 1
    %12 = vsyncpa %s11, 0
    loop: start=0, step=1, limit=4
    $region2: #{tpu_custom_call.1} parent=1 // loop_pre_header
      _
    $region3: #{tpu_custom_call.1} parent=1 // loop_header
      %s14 = sphi 0, %s18
      %p15 = scmp.ge.s32.totalorder %s14, 4
      %s21 = sphi 0, %s40
      %s22 = sphi 0, %s36
      %s23 = sphi 0, %s32
      %s24 = sphi 0, %s21
      %s25 = sphi 0, %s22
      %s26 = sphi 0, %s23
      %s27 = sphi 0, %s24
      %s28 = sphi 0, %s25
      %s29 = sphi 0, %s26
      %s43 = sphi 0, %s45
      %s46 = sphi 0, %s43
      %s47 = sphi 0, %s46
      %s63 = sphi 0, %s47
      %s69 = sphi 0, %s71
      %s72 = sphi 0, %s69
      %s73 = sphi 0, %s72
      %s89 = sphi 0, %s73
      %s95 = sphi 0, %s97
      %s98 = sphi 0, %s95
      %s99 = sphi 0, %s98
      %s115 = sphi 0, %s99
      %s121 = sphi 0, %s123
      %s124 = sphi 0, %s121
      %s125 = sphi 0, %s124
      %s141 = sphi 0, %s125
      %s145 = sphi 0, %s145
      %s147 = sphi 0, %s145
      %s148 = sphi 0, %s147
      %s162 = sphi 0, %s148
      %s170 = sphi 0, %s172
      %s173 = sphi 0, %s170
      %s174 = sphi 0, %s173
      %s190 = sphi 0, %s174
    $region4: #{tpu_custom_call.1} parent=1 // loop_header_branch
      %17 = sbr.rel (%p15) target = $region8
    $region5: #{tpu_custom_call.1} parent=1 // loop_body
      %s19 = ssub.s32 %s14, 1
      %s20 = ssub.s32 %s14, 2
      %s30 = sadd.s32 1, %s23
      %p31 = scmp.ge.s32.totalorder %s30, 1
      %s32 = scalar_select %p31, 0, %s30
      %s33 = sadd.s32 1, %s22
      %s34 = scalar_select %p31, %s33, %s22
      %p35 = scmp.ge.s32.totalorder %s34, 1
      %s36 = scalar_select %p35, 0, %s34
      %s37 = sadd.s32 1, %s21
      %s38 = scalar_select %p35, %s37, %s21
      %p39 = scmp.ge.s32.totalorder %s38, 2
      %s40 = scalar_select %p39, 0, %s38
      %s41 = ssub.s32 %s21, %s40
      %p42 = scmp.eq.s32.totalorder %s41, 0
      %s44 = sadd.s32 %s43, 1
      %s45 = scalar_select %p42, %s43, %s44
      %p48 = pneg %p42
      %p49 = scmp.eq.s32.totalorder %s14, 1
      %p50 = por %p48, %p49
      %p51 = scmp.ne.s32.totalorder %s43, %s46
      %p52 = scmp.eq.s32.totalorder %s14, 0
      %p53 = por %p51, %p52
      %p54 = scmp.ne.s32.totalorder %s43, %s46
      %p55 = scmp.eq.s32.totalorder %s19, 1
      %p56 = por %p54, %p55
      %p57 = scmp.ne.s32.totalorder %s46, %s47
      %p58 = scmp.eq.s32.totalorder %s19, 0
      %p59 = por %p57, %p58
      %p60 = scmp.ne.s32.totalorder %s46, %s47
      %p61 = scmp.eq.s32.totalorder %s20, 1
      %p62 = por %p60, %p61
      %p64 = scmp.ne.s32.totalorder %s47, %s63
      %p65 = scmp.eq.s32.totalorder %s20, 0
      %p66 = por %p64, %p65
      %s67 = ssub.s32 %s23, %s32
      %p68 = scmp.eq.s32.totalorder %s67, 0
      %s70 = sadd.s32 %s69, 1
      %s71 = scalar_select %p68, %s69, %s70
      %p74 = pneg %p68
      %p75 = scmp.eq.s32.totalorder %s14, 1
      %p76 = por %p74, %p75
      %p77 = scmp.ne.s32.totalorder %s69, %s72
      %p78 = scmp.eq.s32.totalorder %s14, 0
      %p79 = por %p77, %p78
      %p80 = scmp.ne.s32.totalorder %s69, %s72
      %p81 = scmp.eq.s32.totalorder %s19, 1
      %p82 = por %p80, %p81
      %p83 = scmp.ne.s32.totalorder %s72, %s73
      %p84 = scmp.eq.s32.totalorder %s19, 0
      %p85 = por %p83, %p84
      %p86 = scmp.ne.s32.totalorder %s72, %s73
      %p87 = scmp.eq.s32.totalorder %s20, 1
      %p88 = por %p86, %p87
      %p90 = scmp.ne.s32.totalorder %s73, %s89
      %p91 = scmp.eq.s32.totalorder %s20, 0
      %p92 = por %p90, %p91
      %s93 = ssub.s32 %s23, %s32
      %p94 = scmp.eq.s32.totalorder %s93, 0
      %s96 = sadd.s32 %s95, 1
      %s97 = scalar_select %p94, %s95, %s96
      %p100 = pneg %p94
      %p101 = scmp.eq.s32.totalorder %s14, 1
      %p102 = por %p100, %p101
      %p103 = scmp.ne.s32.totalorder %s95, %s98
      %p104 = scmp.eq.s32.totalorder %s14, 0
      %p105 = por %p103, %p104
      %p106 = scmp.ne.s32.totalorder %s95, %s98
      %p107 = scmp.eq.s32.totalorder %s19, 1
      %p108 = por %p106, %p107
      %p109 = scmp.ne.s32.totalorder %s98, %s99
      %p110 = scmp.eq.s32.totalorder %s19, 0
      %p111 = por %p109, %p110
      %p112 = scmp.ne.s32.totalorder %s98, %s99
      %p113 = scmp.eq.s32.totalorder %s20, 1
      %p114 = por %p112, %p113
      %p116 = scmp.ne.s32.totalorder %s99, %s115
      %p117 = scmp.eq.s32.totalorder %s20, 0
      %p118 = por %p116, %p117
      %s119 = ssub.s32 %s23, %s32
      %p120 = scmp.eq.s32.totalorder %s119, 0
      %s122 = sadd.s32 %s121, 1
      %s123 = scalar_select %p120, %s121, %s122
      %p126 = pneg %p120
      %p127 = scmp.eq.s32.totalorder %s14, 1
      %p128 = por %p126, %p127
      %p129 = scmp.ne.s32.totalorder %s121, %s124
      %p130 = scmp.eq.s32.totalorder %s14, 0
      %p131 = por %p129, %p130
      %p132 = scmp.ne.s32.totalorder %s121, %s124
      %p133 = scmp.eq.s32.totalorder %s19, 1
      %p134 = por %p132, %p133
      %p135 = scmp.ne.s32.totalorder %s124, %s125
      %p136 = scmp.eq.s32.totalorder %s19, 0
      %p137 = por %p135, %p136
      %p138 = scmp.ne.s32.totalorder %s124, %s125
      %p139 = scmp.eq.s32.totalorder %s20, 1
      %p140 = por %p138, %p139
      %p142 = scmp.ne.s32.totalorder %s125, %s141
      %p143 = scmp.eq.s32.totalorder %s20, 0
      %p144 = por %p142, %p143
      %s146 = sadd.s32 %s145, 1
      %p149 = scmp.eq.s32.totalorder %s14, 1
      %p150 = scmp.ne.s32.totalorder %s145, %s147
      %p151 = scmp.eq.s32.totalorder %s14, 0
      %p152 = por %p150, %p151
      %p153 = scmp.ne.s32.totalorder %s145, %s147
      %p154 = scmp.eq.s32.totalorder %s19, 1
      %p155 = por %p153, %p154
      %p156 = scmp.ne.s32.totalorder %s147, %s148
      %p157 = scmp.eq.s32.totalorder %s19, 0
      %p158 = por %p156, %p157
      %p159 = scmp.ne.s32.totalorder %s147, %s148
      %p160 = scmp.eq.s32.totalorder %s20, 1
      %p161 = por %p159, %p160
      %p163 = scmp.ne.s32.totalorder %s148, %s162
      %p164 = scmp.eq.s32.totalorder %s20, 0
      %p165 = por %p163, %p164
      %s166 = ssub.s32 %s21, %s40
      %s167 = ssub.s32 %s22, %s36
      %s168 = sor.u32 %s166, %s167
      %p169 = scmp.eq.s32.totalorder %s168, 0
      %s171 = sadd.s32 %s170, 1
      %s172 = scalar_select %p169, %s170, %s171
      %p175 = pneg %p169
      %p176 = scmp.eq.s32.totalorder %s14, 1
      %p177 = por %p175, %p176
      %p178 = scmp.ne.s32.totalorder %s170, %s173
      %p179 = scmp.eq.s32.totalorder %s14, 0
      %p180 = por %p178, %p179
      %p181 = scmp.ne.s32.totalorder %s170, %s173
      %p182 = scmp.eq.s32.totalorder %s19, 1
      %p183 = por %p181, %p182
      %p184 = scmp.ne.s32.totalorder %s173, %s174
      %p185 = scmp.eq.s32.totalorder %s19, 0
      %p186 = por %p184, %p185
      %p187 = scmp.ne.s32.totalorder %s173, %s174
      %p188 = scmp.eq.s32.totalorder %s20, 1
      %p189 = por %p187, %p188
      %p191 = scmp.ne.s32.totalorder %s174, %s190
      %p192 = scmp.eq.s32.totalorder %s20, 0
      %p193 = por %p191, %p192
      %p194 = scmp.le.s32.totalorder 1, %s14
      %p195 = scmp.lt.s32.totalorder %s14, 3
      %p196 = pnand %p194, %p195
      %p197 = pneg %p196
      // Predicated region
      $region9: #{tpu_custom_call.1} parent=5 // pred_check
        _
      $region10: #{tpu_custom_call.1} parent=5 // pred_check_branch
        %199 = sbr.rel (%p196) target = $region12
      $region11: #{tpu_custom_call.1} parent=5 // pred_region
        %s200 = ssub.s32 %s14, 1
        // Predicated region
        $region13: #{tpu_custom_call.1} parent=11 // pred_check
          %p201 = pneg %p85
        $region14: #{tpu_custom_call.1} parent=11 // pred_check_branch
          %203 = sbr.rel (%p201) target = $region16
        $region15: #{tpu_custom_call.1} parent=11 // pred_region
          %p204 = scmp.lt.s32.totalorder %s26, 0
          %s205 = scalar_select %p204, %s26, 0
          %s206 = smul.addr %s205, 4
          %s207 = smul.addr %s206, 8
          %s208 = scalar_lea.vmem %s1, %s207
        $region16: #{tpu_custom_call.1} parent=11 // pred_fallthru
          _
        // Predicated region
        $region17: #{tpu_custom_call.1} parent=11 // pred_check
          %p209 = pneg %p111
        $region18: #{tpu_custom_call.1} parent=11 // pred_check_branch
          %211 = sbr.rel (%p209) target = $region20
        $region19: #{tpu_custom_call.1} parent=11 // pred_region
          %p212 = scmp.lt.s32.totalorder %s26, 0
          %s213 = scalar_select %p212, %s26, 0
          %s214 = smul.addr %s213, 4
          %s215 = smul.addr %s214, 8
          %s216 = scalar_lea.vmem %s2, %s215
        $region20: #{tpu_custom_call.1} parent=11 // pred_fallthru
          _
        // Predicated region
        $region21: #{tpu_custom_call.1} parent=11 // pred_check
          %p217 = pneg %p137
        $region22: #{tpu_custom_call.1} parent=11 // pred_check_branch
          %219 = sbr.rel (%p217) target = $region24
        $region23: #{tpu_custom_call.1} parent=11 // pred_region
          %p220 = scmp.lt.s32.totalorder %s26, 0
          %s221 = scalar_select %p220, %s26, 0
          %s222 = smul.addr %s221, 8
          %s223 = smul.addr %s222, 8
          %s224 = scalar_lea.vmem %s3, %s223
        $region24: #{tpu_custom_call.1} parent=11 // pred_fallthru
          _
        // Predicated region
        $region25: #{tpu_custom_call.1} parent=11 // pred_check
          %p225 = pneg %p158
        $region26: #{tpu_custom_call.1} parent=11 // pred_check_branch
          %227 = sbr.rel (%p225) target = $region28
        $region27: #{tpu_custom_call.1} parent=11 // pred_region
          _
        $region28: #{tpu_custom_call.1} parent=11 // pred_fallthru
          _
      $region12: #{tpu_custom_call.1} parent=5 // pred_fallthru
        _
      %p228 = scmp.lt.s32.totalorder %s14, 2
      // Predicated region
      $region29: #{tpu_custom_call.1} parent=5 // pred_check
        %p229 = pneg %p228
      $region30: #{tpu_custom_call.1} parent=5 // pred_check_branch
        %231 = sbr.rel (%p229) target = $region32
      $region31: #{tpu_custom_call.1} parent=5 // pred_region
        // Predicated region
        $region33: #{tpu_custom_call.1} parent=31 // pred_check
          %p232 = pneg %p53
        $region34: #{tpu_custom_call.1} parent=31 // pred_check_branch
          %234 = sbr.rel (%p232) target = $region36
        $region35: #{tpu_custom_call.1} parent=31 // pred_region
          %p235 = scmp.lt.s32.totalorder %s21, 1
          %s236 = scalar_select %p235, %s21, 1
          %s237 = smul.addr %s236, 2
          %s238 = smul.addr %s237, 8
          %s239 = scalar_lea.vmem %s0, %s238
        $region36: #{tpu_custom_call.1} parent=31 // pred_fallthru
          _
      $region32: #{tpu_custom_call.1} parent=5 // pred_fallthru
        _
      %p240 = scmp.le.s32.totalorder 1, %s14
      %p241 = scmp.lt.s32.totalorder %s14, 3
      %p242 = pnand %p240, %p241
      %p243 = pneg %p242
      // Predicated region
      $region37: #{tpu_custom_call.1} parent=5 // pred_check
        _
      $region38: #{tpu_custom_call.1} parent=5 // pred_check_branch
        %245 = sbr.rel (%p242) target = $region40
      $region39: #{tpu_custom_call.1} parent=5 // pred_region
        %s246 = ssub.s32 %s14, 1
        %p247 = scmp.lt.s32.totalorder %s24, 1
        %s248 = scalar_select %p247, %s24, 1
        %s249 = smul.addr %s248, 2
        %s250 = smul.addr %s249, 8
        %s251 = scalar_lea.vmem %s0, %s250
        %p252 = pneg %p59
        %p253 = pneg %p56
        %p254 = scmp.lt.s32.totalorder %s26, 0
        %s255 = scalar_select %p254, %s26, 0
        %s256 = smul.addr %s255, 4
        %s257 = smul.addr %s256, 8
        %s258 = scalar_lea.vmem %s1, %s257
        %p259 = pneg %p85
        %p260 = pneg %p82
        %p261 = scmp.lt.s32.totalorder %s26, 0
        %s262 = scalar_select %p261, %s26, 0
        %s263 = smul.addr %s262, 4
        %s264 = smul.addr %s263, 8
        %s265 = scalar_lea.vmem %s2, %s264
        %p266 = pneg %p111
        %p267 = pneg %p108
        %p268 = scmp.lt.s32.totalorder %s26, 0
        %s269 = scalar_select %p268, %s26, 0
        %s270 = smul.addr %s269, 8
        %s271 = smul.addr %s270, 8
        %s272 = scalar_lea.vmem %s3, %s271
        %p273 = pneg %p137
        %p274 = pneg %p134
        %p275 = pneg %p158
        %p276 = pneg %p155
        %p277 = pneg %p186
        %p278 = pneg %p183
        %s279 = sand.u32 %s173, 1
        %s280 = scalar_lea.sflag [#allocation5], %s279
        %s281 = sand.u32 %s173, 1
        %s282 = smul.addr %s281, 16
        %s283 = scalar_lea.vmem [#allocation4], %s282
        %p284 = scmp.lt.s32.totalorder %s24, 1
        %s285 = scalar_select %p284, %s24, 1
        %s286 = smul.addr %s285, 2
        %s287 = smul.addr %s286, 8
        %s288 = scalar_lea.vmem %s0, %s287
        %p289 = scmp.lt.s32.totalorder %s26, 0
        %s290 = scalar_select %p289, %s26, 0
        %s291 = smul.addr %s290, 4
        %s292 = smul.addr %s291, 8
        %s293 = scalar_lea.vmem %s1, %s292
        %p294 = scmp.lt.s32.totalorder %s26, 0
        %s295 = scalar_select %p294, %s26, 0
        %s296 = smul.addr %s295, 4
        %s297 = smul.addr %s296, 8
        %s298 = scalar_lea.vmem %s2, %s297
        %p299 = scmp.lt.s32.totalorder %s26, 0
        %s300 = scalar_select %p299, %s26, 0
        %s301 = smul.addr %s300, 8
        %s302 = smul.addr %s301, 8
        %s303 = scalar_lea.vmem %s3, %s302
        %s304 = smul.u32 2, %s25
        %v305 = vld [vmem:[%s288] sm:$0xff]
        %v306 = vld [vmem:[%s288 + $0x8] sm:$0xff]
        %v307 = vld [vmem:[%s298] sm:$0xff]
        %v308 = vld [vmem:[%s298 + $0x8] sm:$0xff]
        %v309 = vld [vmem:[%s298 + $0x10] sm:$0xff]
        %v310 = vld [vmem:[%s298 + $0x18] sm:$0xff]
        %vm311 = vcmask 261120
        %v313 = vsel %vm311, %v305, 0
        %v316 = vsel %vm311, %v306, 0
        %318 = vmatpush.msra.mxu0 0.0
        %319 = vmatpush.msra.mxu0 0.0
        %320 = vmatpush.msra.mxu0 0.0
        %321 = vmatpush.msra.mxu0 0.0
        %322 = vmatpush.msra.mxu0 0.0
        %323 = vmatpush.msra.mxu0 0.0
        %324 = vmatpush.msra.mxu0 0.0
        %325 = vmatpush.msra.mxu0 0.0
        %326 = vmatpush.msra.mxu0 0.0
        %327 = vmatpush.msra.mxu0 0.0
        %328 = vmatpush.msra.mxu0 0.0
        %329 = vmatpush.msra.mxu0 0.0
        %330 = vmatpush.msra.mxu0 %v310
        %331 = vmatpush.msra.mxu0 %v309
        %332 = vmatpush.msra.mxu0 %v308
        %333 = vmatpush.msra.mxu0 %v307
        %334 = vmatmul.f32.gmra.mxu0 %v313
        %v335 = vpop.f32.mrf.mxu0
        %v336 = vadd.f32 0.0, %v335
        %337 = vmatmul.f32.gmra.mxu0 %v316
        %v338 = vpop.f32.mrf.mxu0
        %v339 = vadd.f32 0.0, %v338
        %340 = vdwg.mxu0
        %341 = vst [vmem:[#allocation3] sm:$0xff] %v336
        %342 = vst [vmem:[#allocation3 + $0x8] sm:$0xff] %v339
        %v343 = vld [vmem:[%s293] sm:$0xff]
        %v344 = vld [vmem:[%s293 + $0x8] sm:$0xff]
        %v345 = vld [vmem:[%s293 + $0x10] sm:$0xff]
        %v346 = vld [vmem:[%s293 + $0x18] sm:$0xff]
        %347 = vmatpush.msra.mxu0 0.0
        %348 = vmatpush.msra.mxu0 0.0
        %349 = vmatpush.msra.mxu0 0.0
        %350 = vmatpush.msra.mxu0 0.0
        %351 = vmatpush.msra.mxu0 0.0
        %352 = vmatpush.msra.mxu0 0.0
        %353 = vmatpush.msra.mxu0 0.0
        %354 = vmatpush.msra.mxu0 0.0
        %355 = vmatpush.msra.mxu0 0.0
        %356 = vmatpush.msra.mxu0 0.0
        %357 = vmatpush.msra.mxu0 0.0
        %358 = vmatpush.msra.mxu0 0.0
        %359 = vmatpush.msra.mxu0 %v346
        %360 = vmatpush.msra.mxu0 %v345
        %361 = vmatpush.msra.mxu0 %v344
        %362 = vmatpush.msra.mxu0 %v343
        %363 = vmatmul.f32.gmra.mxu0 %v313
        %v364 = vpop.f32.mrf.mxu0
        %v365 = vadd.f32 0.0, %v364
        %366 = vmatmul.f32.gmra.mxu0 %v316
        %v367 = vpop.f32.mrf.mxu0
        %v368 = vadd.f32 0.0, %v367
        %369 = vdwg.mxu0
        %v370 = vld [vmem:[#allocation3] sm:$0xff]
        %v371 = vld [vmem:[#allocation3 + $0x8] sm:$0xff]
        %vm372 = vcmask 64512
        %v374 = vsel %vm372, %v365, 0
        %v377 = vsel %vm372, %v368, 0
        %v380 = vsel %vm372, %v370, 0
        %v383 = vsel %vm372, %v371, 0
        %385 = vmatpush.xpose.msra.mxu0 0.0
        %386 = vmatpush.xpose.msra.mxu0 0.0
        %387 = vmatpush.xpose.msra.mxu0 0.0
        %388 = vmatpush.xpose.msra.mxu0 0.0
        %389 = vmatpush.xpose.msra.mxu0 0.0
        %390 = vmatpush.xpose.msra.mxu0 0.0
        %391 = vmatpush.xpose.msra.mxu0 0.0
        %392 = vmatpush.xpose.msra.mxu0 0.0
        %393 = vmatpush.xpose.msra.mxu0 0.0
        %394 = vmatpush.xpose.msra.mxu0 0.0
        %395 = vmatpush.xpose.msra.mxu0 0.0
        %396 = vmatpush.xpose.msra.mxu0 0.0
        %397 = vmatpush.xpose.msra.mxu0 0.0
        %398 = vmatpush.xpose.msra.mxu0 0.0
        %399 = vmatpush.xpose.msra.mxu0 %v383
        %400 = vmatpush.xpose.msra.mxu0 %v380
        %401 = vmatmul.f32.gmra.mxu0 %v374
        %v402 = vpop.f32.mrf.mxu0
        %v403 = vadd.f32 0.0, %v402
        %404 = vmatmul.f32.gmra.mxu0 %v377
        %v405 = vpop.f32.mrf.mxu0
        %v406 = vadd.f32 0.0, %v405
        %407 = vdwg.mxu0
        %v408 = vmul.f32 %v403, 0.35355338
        %v409 = vmul.f32 %v406, 0.35355338
        %410 = vrot.lane.b32.xlu0 %v365, 120
        %v411 = vpop.permute.xlu0 %410
        %412 = vrot.lane.b32.xlu0 %v368, 120
        %v413 = vpop.permute.xlu0 %412
        %414 = vrot.lane.b32.xlu0 %v370, 120
        %v415 = vpop.permute.xlu0 %414
        %416 = vrot.lane.b32.xlu0 %v371, 120
        %v417 = vpop.permute.xlu0 %416
        %v418 = vsel %vm372, %v411, 0
        %v420 = vsel %vm372, %v413, 0
        %v422 = vsel %vm372, %v415, 0
        %v424 = vsel %vm372, %v417, 0
        %426 = vmatpush.xpose.msra.mxu0 0.0
        %427 = vmatpush.xpose.msra.mxu0 0.0
        %428 = vmatpush.xpose.msra.mxu0 0.0
        %429 = vmatpush.xpose.msra.mxu0 0.0
        %430 = vmatpush.xpose.msra.mxu0 0.0
        %431 = vmatpush.xpose.msra.mxu0 0.0
        %432 = vmatpush.xpose.msra.mxu0 0.0
        %433 = vmatpush.xpose.msra.mxu0 0.0
        %434 = vmatpush.xpose.msra.mxu0 0.0
        %435 = vmatpush.xpose.msra.mxu0 0.0
        %436 = vmatpush.xpose.msra.mxu0 0.0
        %437 = vmatpush.xpose.msra.mxu0 0.0
        %438 = vmatpush.xpose.msra.mxu0 0.0
        %439 = vmatpush.xpose.msra.mxu0 0.0
        %440 = vmatpush.xpose.msra.mxu0 %v424
        %441 = vmatpush.xpose.msra.mxu0 %v422
        %442 = vmatmul.f32.gmra.mxu0 %v418
        %v443 = vpop.f32.mrf.mxu0
        %v444 = vadd.f32 0.0, %v443
        %445 = vmatmul.f32.gmra.mxu0 %v420
        %v446 = vpop.f32.mrf.mxu0
        %v447 = vadd.f32 0.0, %v446
        %448 = vdwg.mxu0
        %v449 = vmul.f32 %v444, 0.35355338
        %v450 = vmul.f32 %v447, 0.35355338
        %vm451 = vcmask 130048
        %v452 = vsel %vm451, %v408, -inf
        %453 = vmax.xlane.f32.xlu0 %v452
        %v454 = vpop.xlane.xlu0 %453
        %v455 = vsel %vm451, %v409, -inf
        %456 = vmax.xlane.f32.xlu0 %v455
        %v457 = vpop.xlane.xlu0 %456
        %v458 = vsub.f32 %v408, %v454
        %v459 = vsub.f32 %v409, %v457
        %v460 = vmul.f32 %v458, 1.442695
        %v461 = vpow.pop %v460
        %v462 = vmul.f32 %v459, 1.442695
        %v463 = vpow.pop %v462
        %v464 = vsel %vm451, %v461, 0.0
        %465 = vadd.xlane.f32.xlu0 %v464
        %v466 = vpop.xlane.xlu0 %465
        %v467 = vsel %vm451, %v463, 0.0
        %468 = vadd.xlane.f32.xlu0 %v467
        %v469 = vpop.xlane.xlu0 %468
        %v470 = vrcp.pop %v466
        %v471 = vrcp.pop %v469
        %v472 = vmul.f32 %v466, %v470
        %v473 = vmul.f32 %v469, %v471
        %v474 = vsub.f32 2.0, %v472
        %v475 = vsub.f32 2.0, %v473
        %v476 = vmul.f32 %v470, %v474
        %v477 = vmul.f32 %v471, %v475
        %v478 = vmul.f32 %v461, %v476
        %v479 = vmul.f32 %v463, %v477
        %v480 = vsel %vm451, %v449, -inf
        %481 = vmax.xlane.f32.xlu0 %v480
        %v482 = vpop.xlane.xlu0 %481
        %v483 = vsel %vm451, %v450, -inf
        %484 = vmax.xlane.f32.xlu0 %v483
        %v485 = vpop.xlane.xlu0 %484
        %v486 = vsub.f32 %v449, %v482
        %v487 = vsub.f32 %v450, %v485
        %v488 = vmul.f32 %v486, 1.442695
        %v489 = vpow.pop %v488
        %v490 = vmul.f32 %v487, 1.442695
        %v491 = vpow.pop %v490
        %v492 = vsel %vm451, %v489, 0.0
        %493 = vadd.xlane.f32.xlu0 %v492
        %v494 = vpop.xlane.xlu0 %493
        %v495 = vsel %vm451, %v491, 0.0
        %496 = vadd.xlane.f32.xlu0 %v495
        %v497 = vpop.xlane.xlu0 %496
        %v498 = vrcp.pop %v494
        %v499 = vrcp.pop %v497
        %v500 = vmul.f32 %v494, %v498
        %v501 = vmul.f32 %v497, %v499
        %v502 = vsub.f32 2.0, %v500
        %v503 = vsub.f32 2.0, %v501
        %v504 = vmul.f32 %v498, %v502
        %v505 = vmul.f32 %v499, %v503
        %v506 = vmul.f32 %v489, %v504
        %v507 = vmul.f32 %v491, %v505
        %v508 = vsub.f32 %v478, %v506
        %v509 = vsub.f32 %v479, %v507
        %510 = vrot.lane.b32.xlu0 %v370, 112
        %v511 = vpop.permute.xlu0 %510
        %512 = vrot.lane.b32.xlu0 %v371, 112
        %v513 = vpop.permute.xlu0 %512
        %v517 = vsel %vm451, %v508, 0
        %v520 = vsel %vm451, %v509, 0
        %522 = vmatpush.msra.mxu0 0.0
        %523 = vmatpush.msra.mxu0 0.0
        %524 = vmatpush.msra.mxu0 0.0
        %525 = vmatpush.msra.mxu0 0.0
        %526 = vmatpush.msra.mxu0 0.0
        %527 = vmatpush.msra.mxu0 0.0
        %528 = vmatpush.msra.mxu0 0.0
        %529 = vmatpush.msra.mxu0 0.0
        %530 = vmatpush.msra.mxu0 0.0
        %531 = vmatpush.msra.mxu0 0.0
        %532 = vmatpush.msra.mxu0 0.0
        %533 = vmatpush.msra.mxu0 0.0
        %534 = vmatpush.msra.mxu0 0.0
        %535 = vmatpush.msra.mxu0 0.0
        %536 = vmatpush.msra.mxu0 %v513
        %537 = vmatpush.msra.mxu0 %v511
        %538 = vmatmul.f32.gmra.mxu0 %v517
        %v539 = vpop.f32.mrf.mxu0
        %v540 = vadd.f32 0.0, %v539
        %541 = vmatmul.f32.gmra.mxu0 %v520
        %v542 = vpop.f32.mrf.mxu0
        %v543 = vadd.f32 0.0, %v542
        %544 = vdwg.mxu0
        %v545 = vsel %vm451, %v540, 0.0
        %546 = vadd.xlane.f32.xlu0 %v545
        %v547 = vpop.xlane.xlu0 %546
        %v548 = vsel %vm451, %v543, 0.0
        %549 = vadd.xlane.f32.xlu0 %v548
        %v550 = vpop.xlane.xlu0 %549
        %v551 = vrcp.pop 16.0
        %v552 = vmul.f32 16.0, %v551
        %v553 = vsub.f32 1.0, %v552
        %v554 = vmul.f32 %v551, %v553
        %v555 = vadd.f32 %v551, %v554
        %vm556 = vweird.f32 %v551
        %v557 = vsel %vm556, %v551, %v555
        %v558 = vmul.f32 %v547, %v557
        %v559 = vmul.f32 %v550, %v557
        %v560 = vsub.f32 %v540, %v558
        %v561 = vsub.f32 %v543, %v559
        %v562 = vmul.f32 %v560, %v560
        %v563 = vmul.f32 %v561, %v561
        %v564 = vsel %vm451, %v562, 0.0
        %565 = vadd.xlane.f32.xlu0 %v564
        %v566 = vpop.xlane.xlu0 %565
        %v567 = vsel %vm451, %v563, 0.0
        %568 = vadd.xlane.f32.xlu0 %v567
        %v569 = vpop.xlane.xlu0 %568
        %v570 = vmul.f32 %v566, %v557
        %v571 = vmul.f32 %v569, %v557
        %v572 = vadd.f32 %v570, 1e-05
        %v573 = vadd.f32 %v571, 1e-05
        %v574 = vrsqrt.pop %v572
        %v575 = vmul.f32 %v574, %v572
        %v576 = vmul.f32 %v575, %v574
        %v577 = vmul.f32 0.5, %v576
        %v578 = vsub.f32 1.5, %v577
        %v579 = vmul.f32 %v574, %v578
        %vm580 = vweird.f32 %v572
        %vm581 = vweird.f32 %v574
        %vm582 = vmor %vm580, %vm581
        %v583 = vsel %vm582, %v574, %v579
        %v584 = vrsqrt.pop %v573
        %v585 = vmul.f32 %v584, %v573
        %v586 = vmul.f32 %v585, %v584
        %v587 = vmul.f32 0.5, %v586
        %v588 = vsub.f32 1.5, %v587
        %v589 = vmul.f32 %v584, %v588
        %vm590 = vweird.f32 %v573
        %vm591 = vweird.f32 %v584
        %vm592 = vmor %vm590, %vm591
        %v593 = vsel %vm592, %v584, %v589
        %v594 = vmul.f32 %v560, %v583
        %v595 = vmul.f32 %v561, %v593
        %596 = vst.msk [vmem:[#allocation2] sm:$0xff] %vm451, %v594
        %597 = vst.msk [vmem:[#allocation2 + $0x8] sm:$0xff] %vm451, %v595
        %v598 = vld [vmem:[#allocation3] sm:$0xff]
        %v599 = vld [vmem:[#allocation3 + $0x8] sm:$0xff]
        %600 = vrot.lane.b32.xlu0 %v365, 112
        %v601 = vpop.permute.xlu0 %600
        %602 = vrot.lane.b32.xlu0 %v368, 112
        %v603 = vpop.permute.xlu0 %602
        %606 = vrot.lane.b32.xlu0 %v598, 96
        %v607 = vpop.permute.xlu0 %606
        %608 = vrot.lane.b32.xlu0 %v599, 96
        %v609 = vpop.permute.xlu0 %608
        %v610 = vsel %vm372, %v601, 0
        %v612 = vsel %vm372, %v603, 0
        %v614 = vsel %vm372, %v607, 0
        %v616 = vsel %vm372, %v609, 0
        %618 = vmatpush.xpose.msra.mxu0 0.0
        %619 = vmatpush.xpose.msra.mxu0 0.0
        %620 = vmatpush.xpose.msra.mxu0 0.0
        %621 = vmatpush.xpose.msra.mxu0 0.0
        %622 = vmatpush.xpose.msra.mxu0 0.0
        %623 = vmatpush.xpose.msra.mxu0 0.0
        %624 = vmatpush.xpose.msra.mxu0 0.0
        %625 = vmatpush.xpose.msra.mxu0 0.0
        %626 = vmatpush.xpose.msra.mxu0 0.0
        %627 = vmatpush.xpose.msra.mxu0 0.0
        %628 = vmatpush.xpose.msra.mxu0 0.0
        %629 = vmatpush.xpose.msra.mxu0 0.0
        %630 = vmatpush.xpose.msra.mxu0 0.0
        %631 = vmatpush.xpose.msra.mxu0 0.0
        %632 = vmatpush.xpose.msra.mxu0 %v616
        %633 = vmatpush.xpose.msra.mxu0 %v614
        %634 = vmatmul.f32.gmra.mxu0 %v610
        %v635 = vpop.f32.mrf.mxu0
        %v636 = vadd.f32 0.0, %v635
        %637 = vmatmul.f32.gmra.mxu0 %v612
        %v638 = vpop.f32.mrf.mxu0
        %v639 = vadd.f32 0.0, %v638
        %640 = vdwg.mxu0
        %v641 = vmul.f32 %v636, 0.35355338
        %v642 = vmul.f32 %v639, 0.35355338
        %643 = vrot.lane.b32.xlu0 %v365, 104
        %v644 = vpop.permute.xlu0 %643
        %645 = vrot.lane.b32.xlu0 %v368, 104
        %v646 = vpop.permute.xlu0 %645
        %647 = vrot.lane.b32.xlu0 %v598, 88
        %v648 = vpop.permute.xlu0 %647
        %649 = vrot.lane.b32.xlu0 %v599, 88
        %v650 = vpop.permute.xlu0 %649
        %v651 = vsel %vm372, %v644, 0
        %v653 = vsel %vm372, %v646, 0
        %v655 = vsel %vm372, %v648, 0
        %v657 = vsel %vm372, %v650, 0
        %659 = vmatpush.xpose.msra.mxu0 0.0
        %660 = vmatpush.xpose.msra.mxu0 0.0
        %661 = vmatpush.xpose.msra.mxu0 0.0
        %662 = vmatpush.xpose.msra.mxu0 0.0
        %663 = vmatpush.xpose.msra.mxu0 0.0
        %664 = vmatpush.xpose.msra.mxu0 0.0
        %665 = vmatpush.xpose.msra.mxu0 0.0
        %666 = vmatpush.xpose.msra.mxu0 0.0
        %667 = vmatpush.xpose.msra.mxu0 0.0
        %668 = vmatpush.xpose.msra.mxu0 0.0
        %669 = vmatpush.xpose.msra.mxu0 0.0
        %670 = vmatpush.xpose.msra.mxu0 0.0
        %671 = vmatpush.xpose.msra.mxu0 0.0
        %672 = vmatpush.xpose.msra.mxu0 0.0
        %673 = vmatpush.xpose.msra.mxu0 %v657
        %674 = vmatpush.xpose.msra.mxu0 %v655
        %675 = vmatmul.f32.gmra.mxu0 %v651
        %v676 = vpop.f32.mrf.mxu0
        %v677 = vadd.f32 0.0, %v676
        %678 = vmatmul.f32.gmra.mxu0 %v653
        %v679 = vpop.f32.mrf.mxu0
        %v680 = vadd.f32 0.0, %v679
        %681 = vdwg.mxu0
        %v682 = vmul.f32 %v677, 0.35355338
        %v683 = vmul.f32 %v680, 0.35355338
        %v684 = vsel %vm451, %v641, -inf
        %685 = vmax.xlane.f32.xlu0 %v684
        %v686 = vpop.xlane.xlu0 %685
        %v687 = vsel %vm451, %v642, -inf
        %688 = vmax.xlane.f32.xlu0 %v687
        %v689 = vpop.xlane.xlu0 %688
        %v690 = vsub.f32 %v641, %v686
        %v691 = vsub.f32 %v642, %v689
        %v692 = vmul.f32 %v690, 1.442695
        %v693 = vpow.pop %v692
        %v694 = vmul.f32 %v691, 1.442695
        %v695 = vpow.pop %v694
        %v696 = vsel %vm451, %v693, 0.0
        %697 = vadd.xlane.f32.xlu0 %v696
        %v698 = vpop.xlane.xlu0 %697
        %v699 = vsel %vm451, %v695, 0.0
        %700 = vadd.xlane.f32.xlu0 %v699
        %v701 = vpop.xlane.xlu0 %700
        %v702 = vrcp.pop %v698
        %v703 = vrcp.pop %v701
        %v704 = vmul.f32 %v698, %v702
        %v705 = vmul.f32 %v701, %v703
        %v706 = vsub.f32 2.0, %v704
        %v707 = vsub.f32 2.0, %v705
        %v708 = vmul.f32 %v702, %v706
        %v709 = vmul.f32 %v703, %v707
        %v710 = vmul.f32 %v693, %v708
        %v711 = vmul.f32 %v695, %v709
        %v712 = vsel %vm451, %v682, -inf
        %713 = vmax.xlane.f32.xlu0 %v712
        %v714 = vpop.xlane.xlu0 %713
        %v715 = vsel %vm451, %v683, -inf
        %716 = vmax.xlane.f32.xlu0 %v715
        %v717 = vpop.xlane.xlu0 %716
        %v718 = vsub.f32 %v682, %v714
        %v719 = vsub.f32 %v683, %v717
        %v720 = vmul.f32 %v718, 1.442695
        %v721 = vpow.pop %v720
        %v722 = vmul.f32 %v719, 1.442695
        %v723 = vpow.pop %v722
        %v724 = vsel %vm451, %v721, 0.0
        %725 = vadd.xlane.f32.xlu0 %v724
        %v726 = vpop.xlane.xlu0 %725
        %v727 = vsel %vm451, %v723, 0.0
        %728 = vadd.xlane.f32.xlu0 %v727
        %v729 = vpop.xlane.xlu0 %728
        %v730 = vrcp.pop %v726
        %v731 = vrcp.pop %v729
        %v732 = vmul.f32 %v726, %v730
        %v733 = vmul.f32 %v729, %v731
        %v734 = vsub.f32 2.0, %v732
        %v735 = vsub.f32 2.0, %v733
        %v736 = vmul.f32 %v730, %v734
        %v737 = vmul.f32 %v731, %v735
        %v738 = vmul.f32 %v721, %v736
        %v739 = vmul.f32 %v723, %v737
        %v740 = vsub.f32 %v710, %v738
        %v741 = vsub.f32 %v711, %v739
        %742 = vrot.lane.b32.xlu0 %v598, 80
        %v743 = vpop.permute.xlu0 %742
        %744 = vrot.lane.b32.xlu0 %v599, 80
        %v745 = vpop.permute.xlu0 %744
        %v749 = vsel %vm451, %v740, 0
        %v752 = vsel %vm451, %v741, 0
        %754 = vmatpush.msra.mxu0 0.0
        %755 = vmatpush.msra.mxu0 0.0
        %756 = vmatpush.msra.mxu0 0.0
        %757 = vmatpush.msra.mxu0 0.0
        %758 = vmatpush.msra.mxu0 0.0
        %759 = vmatpush.msra.mxu0 0.0
        %760 = vmatpush.msra.mxu0 0.0
        %761 = vmatpush.msra.mxu0 0.0
        %762 = vmatpush.msra.mxu0 0.0
        %763 = vmatpush.msra.mxu0 0.0
        %764 = vmatpush.msra.mxu0 0.0
        %765 = vmatpush.msra.mxu0 0.0
        %766 = vmatpush.msra.mxu0 0.0
        %767 = vmatpush.msra.mxu0 0.0
        %768 = vmatpush.msra.mxu0 %v745
        %769 = vmatpush.msra.mxu0 %v743
        %770 = vmatmul.f32.gmra.mxu0 %v749
        %v771 = vpop.f32.mrf.mxu0
        %v772 = vadd.f32 0.0, %v771
        %773 = vmatmul.f32.gmra.mxu0 %v752
        %v774 = vpop.f32.mrf.mxu0
        %v775 = vadd.f32 0.0, %v774
        %776 = vdwg.mxu0
        %v777 = vsel %vm451, %v772, 0.0
        %778 = vadd.xlane.f32.xlu0 %v777
        %v779 = vpop.xlane.xlu0 %778
        %v780 = vsel %vm451, %v775, 0.0
        %781 = vadd.xlane.f32.xlu0 %v780
        %v782 = vpop.xlane.xlu0 %781
        %v783 = vmul.f32 %v779, %v557
        %v784 = vmul.f32 %v782, %v557
        %v785 = vsub.f32 %v772, %v783
        %v786 = vsub.f32 %v775, %v784
        %v787 = vmul.f32 %v785, %v785
        %v788 = vmul.f32 %v786, %v786
        %v789 = vsel %vm451, %v787, 0.0
        %790 = vadd.xlane.f32.xlu0 %v789
        %v791 = vpop.xlane.xlu0 %790
        %v792 = vsel %vm451, %v788, 0.0
        %793 = vadd.xlane.f32.xlu0 %v792
        %v794 = vpop.xlane.xlu0 %793
        %v795 = vmul.f32 %v791, %v557
        %v796 = vmul.f32 %v794, %v557
        %v797 = vadd.f32 %v795, 1e-05
        %v798 = vadd.f32 %v796, 1e-05
        %v799 = vrsqrt.pop %v797
        %v800 = vmul.f32 %v799, %v797
        %v801 = vmul.f32 %v800, %v799
        %v802 = vmul.f32 0.5, %v801
        %v803 = vsub.f32 1.5, %v802
        %v804 = vmul.f32 %v799, %v803
        %vm805 = vweird.f32 %v797
        %vm806 = vweird.f32 %v799
        %vm807 = vmor %vm805, %vm806
        %v808 = vsel %vm807, %v799, %v804
        %v809 = vrsqrt.pop %v798
        %v810 = vmul.f32 %v809, %v798
        %v811 = vmul.f32 %v810, %v809
        %v812 = vmul.f32 0.5, %v811
        %v813 = vsub.f32 1.5, %v812
        %v814 = vmul.f32 %v809, %v813
        %vm815 = vweird.f32 %v798
        %vm816 = vweird.f32 %v809
        %vm817 = vmor %vm815, %vm816
        %v818 = vsel %vm817, %v809, %v814
        %v819 = vmul.f32 %v785, %v808
        %v820 = vmul.f32 %v786, %v818
        %823 = vrot.lane.b32.xlu0 %v819, 16
        %v824 = vpop.permute.xlu0 %823
        %825 = vrot.lane.b32.xlu0 %v820, 16
        %v826 = vpop.permute.xlu0 %825
        %vm829 = vcmask 261248
        %830 = vst.msk [vmem:[#allocation2] sm:$0xff] %vm829, %v824
        %831 = vst.msk [vmem:[#allocation2 + $0x8] sm:$0xff] %vm829, %v826
        %v832 = vld [vmem:[#allocation3] sm:$0xff]
        %v833 = vld [vmem:[#allocation3 + $0x8] sm:$0xff]
        %834 = vrot.lane.b32.xlu0 %v365, 96
        %v835 = vpop.permute.xlu0 %834
        %836 = vrot.lane.b32.xlu0 %v368, 96
        %v837 = vpop.permute.xlu0 %836
        %840 = vrot.lane.b32.xlu0 %v832, 64
        %v841 = vpop.permute.xlu0 %840
        %842 = vrot.lane.b32.xlu0 %v833, 64
        %v843 = vpop.permute.xlu0 %842
        %v844 = vsel %vm372, %v835, 0
        %v846 = vsel %vm372, %v837, 0
        %v848 = vsel %vm372, %v841, 0
        %v850 = vsel %vm372, %v843, 0
        %852 = vmatpush.xpose.msra.mxu0 0.0
        %853 = vmatpush.xpose.msra.mxu0 0.0
        %854 = vmatpush.xpose.msra.mxu0 0.0
        %855 = vmatpush.xpose.msra.mxu0 0.0
        %856 = vmatpush.xpose.msra.mxu0 0.0
        %857 = vmatpush.xpose.msra.mxu0 0.0
        %858 = vmatpush.xpose.msra.mxu0 0.0
        %859 = vmatpush.xpose.msra.mxu0 0.0
        %860 = vmatpush.xpose.msra.mxu0 0.0
        %861 = vmatpush.xpose.msra.mxu0 0.0
        %862 = vmatpush.xpose.msra.mxu0 0.0
        %863 = vmatpush.xpose.msra.mxu0 0.0
        %864 = vmatpush.xpose.msra.mxu0 0.0
        %865 = vmatpush.xpose.msra.mxu0 0.0
        %866 = vmatpush.xpose.msra.mxu0 %v850
        %867 = vmatpush.xpose.msra.mxu0 %v848
        %868 = vmatmul.f32.gmra.mxu0 %v844
        %v869 = vpop.f32.mrf.mxu0
        %v870 = vadd.f32 0.0, %v869
        %871 = vmatmul.f32.gmra.mxu0 %v846
        %v872 = vpop.f32.mrf.mxu0
        %v873 = vadd.f32 0.0, %v872
        %874 = vdwg.mxu0
        %v875 = vmul.f32 %v870, 0.35355338
        %v876 = vmul.f32 %v873, 0.35355338
        %877 = vrot.lane.b32.xlu0 %v365, 88
        %v878 = vpop.permute.xlu0 %877
        %879 = vrot.lane.b32.xlu0 %v368, 88
        %v880 = vpop.permute.xlu0 %879
        %881 = vrot.lane.b32.xlu0 %v832, 56
        %v882 = vpop.permute.xlu0 %881
        %883 = vrot.lane.b32.xlu0 %v833, 56
        %v884 = vpop.permute.xlu0 %883
        %v885 = vsel %vm372, %v878, 0
        %v887 = vsel %vm372, %v880, 0
        %v889 = vsel %vm372, %v882, 0
        %v891 = vsel %vm372, %v884, 0
        %893 = vmatpush.xpose.msra.mxu0 0.0
        %894 = vmatpush.xpose.msra.mxu0 0.0
        %895 = vmatpush.xpose.msra.mxu0 0.0
        %896 = vmatpush.xpose.msra.mxu0 0.0
        %897 = vmatpush.xpose.msra.mxu0 0.0
        %898 = vmatpush.xpose.msra.mxu0 0.0
        %899 = vmatpush.xpose.msra.mxu0 0.0
        %900 = vmatpush.xpose.msra.mxu0 0.0
        %901 = vmatpush.xpose.msra.mxu0 0.0
        %902 = vmatpush.xpose.msra.mxu0 0.0
        %903 = vmatpush.xpose.msra.mxu0 0.0
        %904 = vmatpush.xpose.msra.mxu0 0.0
        %905 = vmatpush.xpose.msra.mxu0 0.0
        %906 = vmatpush.xpose.msra.mxu0 0.0
        %907 = vmatpush.xpose.msra.mxu0 %v891
        %908 = vmatpush.xpose.msra.mxu0 %v889
        %909 = vmatmul.f32.gmra.mxu0 %v885
        %v910 = vpop.f32.mrf.mxu0
        %v911 = vadd.f32 0.0, %v910
        %912 = vmatmul.f32.gmra.mxu0 %v887
        %v913 = vpop.f32.mrf.mxu0
        %v914 = vadd.f32 0.0, %v913
        %915 = vdwg.mxu0
        %v916 = vmul.f32 %v911, 0.35355338
        %v917 = vmul.f32 %v914, 0.35355338
        %v918 = vsel %vm451, %v875, -inf
        %919 = vmax.xlane.f32.xlu0 %v918
        %v920 = vpop.xlane.xlu0 %919
        %v921 = vsel %vm451, %v876, -inf
        %922 = vmax.xlane.f32.xlu0 %v921
        %v923 = vpop.xlane.xlu0 %922
        %v924 = vsub.f32 %v875, %v920
        %v925 = vsub.f32 %v876, %v923
        %v926 = vmul.f32 %v924, 1.442695
        %v927 = vpow.pop %v926
        %v928 = vmul.f32 %v925, 1.442695
        %v929 = vpow.pop %v928
        %v930 = vsel %vm451, %v927, 0.0
        %931 = vadd.xlane.f32.xlu0 %v930
        %v932 = vpop.xlane.xlu0 %931
        %v933 = vsel %vm451, %v929, 0.0
        %934 = vadd.xlane.f32.xlu0 %v933
        %v935 = vpop.xlane.xlu0 %934
        %v936 = vrcp.pop %v932
        %v937 = vrcp.pop %v935
        %v938 = vmul.f32 %v932, %v936
        %v939 = vmul.f32 %v935, %v937
        %v940 = vsub.f32 2.0, %v938
        %v941 = vsub.f32 2.0, %v939
        %v942 = vmul.f32 %v936, %v940
        %v943 = vmul.f32 %v937, %v941
        %v944 = vmul.f32 %v927, %v942
        %v945 = vmul.f32 %v929, %v943
        %v946 = vsel %vm451, %v916, -inf
        %947 = vmax.xlane.f32.xlu0 %v946
        %v948 = vpop.xlane.xlu0 %947
        %v949 = vsel %vm451, %v917, -inf
        %950 = vmax.xlane.f32.xlu0 %v949
        %v951 = vpop.xlane.xlu0 %950
        %v952 = vsub.f32 %v916, %v948
        %v953 = vsub.f32 %v917, %v951
        %v954 = vmul.f32 %v952, 1.442695
        %v955 = vpow.pop %v954
        %v956 = vmul.f32 %v953, 1.442695
        %v957 = vpow.pop %v956
        %v958 = vsel %vm451, %v955, 0.0
        %959 = vadd.xlane.f32.xlu0 %v958
        %v960 = vpop.xlane.xlu0 %959
        %v961 = vsel %vm451, %v957, 0.0
        %962 = vadd.xlane.f32.xlu0 %v961
        %v963 = vpop.xlane.xlu0 %962
        %v964 = vrcp.pop %v960
        %v965 = vrcp.pop %v963
        %v966 = vmul.f32 %v960, %v964
        %v967 = vmul.f32 %v963, %v965
        %v968 = vsub.f32 2.0, %v966
        %v969 = vsub.f32 2.0, %v967
        %v970 = vmul.f32 %v964, %v968
        %v971 = vmul.f32 %v965, %v969
        %v972 = vmul.f32 %v955, %v970
        %v973 = vmul.f32 %v957, %v971
        %v974 = vsub.f32 %v944, %v972
        %v975 = vsub.f32 %v945, %v973
        %976 = vrot.lane.b32.xlu0 %v832, 48
        %v977 = vpop.permute.xlu0 %976
        %978 = vrot.lane.b32.xlu0 %v833, 48
        %v979 = vpop.permute.xlu0 %978
        %v983 = vsel %vm451, %v974, 0
        %v986 = vsel %vm451, %v975, 0
        %988 = vmatpush.msra.mxu0 0.0
        %989 = vmatpush.msra.mxu0 0.0
        %990 = vmatpush.msra.mxu0 0.0
        %991 = vmatpush.msra.mxu0 0.0
        %992 = vmatpush.msra.mxu0 0.0
        %993 = vmatpush.msra.mxu0 0.0
        %994 = vmatpush.msra.mxu0 0.0
        %995 = vmatpush.msra.mxu0 0.0
        %996 = vmatpush.msra.mxu0 0.0
        %997 = vmatpush.msra.mxu0 0.0
        %998 = vmatpush.msra.mxu0 0.0
        %999 = vmatpush.msra.mxu0 0.0
        %1000 = vmatpush.msra.mxu0 0.0
        %1001 = vmatpush.msra.mxu0 0.0
        %1002 = vmatpush.msra.mxu0 %v979
        %1003 = vmatpush.msra.mxu0 %v977
        %1004 = vmatmul.f32.gmra.mxu0 %v983
        %v1005 = vpop.f32.mrf.mxu0
        %v1006 = vadd.f32 0.0, %v1005
        %1007 = vmatmul.f32.gmra.mxu0 %v986
        %v1008 = vpop.f32.mrf.mxu0
        %v1009 = vadd.f32 0.0, %v1008
        %1010 = vdwg.mxu0
        %v1011 = vsel %vm451, %v1006, 0.0
        %1012 = vadd.xlane.f32.xlu0 %v1011
        %v1013 = vpop.xlane.xlu0 %1012
        %v1014 = vsel %vm451, %v1009, 0.0
        %1015 = vadd.xlane.f32.xlu0 %v1014
        %v1016 = vpop.xlane.xlu0 %1015
        %v1017 = vmul.f32 %v1013, %v557
        %v1018 = vmul.f32 %v1016, %v557
        %v1019 = vsub.f32 %v1006, %v1017
        %v1020 = vsub.f32 %v1009, %v1018
        %v1021 = vmul.f32 %v1019, %v1019
        %v1022 = vmul.f32 %v1020, %v1020
        %v1023 = vsel %vm451, %v1021, 0.0
        %1024 = vadd.xlane.f32.xlu0 %v1023
        %v1025 = vpop.xlane.xlu0 %1024
        %v1026 = vsel %vm451, %v1022, 0.0
        %1027 = vadd.xlane.f32.xlu0 %v1026
        %v1028 = vpop.xlane.xlu0 %1027
        %v1029 = vmul.f32 %v1025, %v557
        %v1030 = vmul.f32 %v1028, %v557
        %v1031 = vadd.f32 %v1029, 1e-05
        %v1032 = vadd.f32 %v1030, 1e-05
        %v1033 = vrsqrt.pop %v1031
        %v1034 = vmul.f32 %v1033, %v1031
        %v1035 = vmul.f32 %v1034, %v1033
        %v1036 = vmul.f32 0.5, %v1035
        %v1037 = vsub.f32 1.5, %v1036
        %v1038 = vmul.f32 %v1033, %v1037
        %vm1039 = vweird.f32 %v1031
        %vm1040 = vweird.f32 %v1033
        %vm1041 = vmor %vm1039, %vm1040
        %v1042 = vsel %vm1041, %v1033, %v1038
        %v1043 = vrsqrt.pop %v1032
        %v1044 = vmul.f32 %v1043, %v1032
        %v1045 = vmul.f32 %v1044, %v1043
        %v1046 = vmul.f32 0.5, %v1045
        %v1047 = vsub.f32 1.5, %v1046
        %v1048 = vmul.f32 %v1043, %v1047
        %vm1049 = vweird.f32 %v1032
        %vm1050 = vweird.f32 %v1043
        %vm1051 = vmor %vm1049, %vm1050
        %v1052 = vsel %vm1051, %v1043, %v1048
        %v1053 = vmul.f32 %v1019, %v1042
        %v1054 = vmul.f32 %v1020, %v1052
        %1057 = vrot.lane.b32.xlu0 %v1053, 32
        %v1058 = vpop.permute.xlu0 %1057
        %1059 = vrot.lane.b32.xlu0 %v1054, 32
        %v1060 = vpop.permute.xlu0 %1059
        %vm1063 = vcmask 392448
        %1064 = vst.msk [vmem:[#allocation2] sm:$0xff] %vm1063, %v1058
        %1065 = vst.msk [vmem:[#allocation2 + $0x8] sm:$0xff] %vm1063, %v1060
        %v1066 = vld [vmem:[#allocation3] sm:$0xff]
        %v1067 = vld [vmem:[#allocation3 + $0x8] sm:$0xff]
        %1068 = vrot.lane.b32.xlu0 %v365, 80
        %v1069 = vpop.permute.xlu0 %1068
        %1070 = vrot.lane.b32.xlu0 %v368, 80
        %v1071 = vpop.permute.xlu0 %1070
        %1074 = vrot.lane.b32.xlu0 %v1066, 32
        %v1075 = vpop.permute.xlu0 %1074
        %1076 = vrot.lane.b32.xlu0 %v1067, 32
        %v1077 = vpop.permute.xlu0 %1076
        %v1078 = vsel %vm372, %v1069, 0
        %v1080 = vsel %vm372, %v1071, 0
        %v1082 = vsel %vm372, %v1075, 0
        %v1084 = vsel %vm372, %v1077, 0
        %1086 = vmatpush.xpose.msra.mxu0 0.0
        %1087 = vmatpush.xpose.msra.mxu0 0.0
        %1088 = vmatpush.xpose.msra.mxu0 0.0
        %1089 = vmatpush.xpose.msra.mxu0 0.0
        %1090 = vmatpush.xpose.msra.mxu0 0.0
        %1091 = vmatpush.xpose.msra.mxu0 0.0
        %1092 = vmatpush.xpose.msra.mxu0 0.0
        %1093 = vmatpush.xpose.msra.mxu0 0.0
        %1094 = vmatpush.xpose.msra.mxu0 0.0
        %1095 = vmatpush.xpose.msra.mxu0 0.0
        %1096 = vmatpush.xpose.msra.mxu0 0.0
        %1097 = vmatpush.xpose.msra.mxu0 0.0
        %1098 = vmatpush.xpose.msra.mxu0 0.0
        %1099 = vmatpush.xpose.msra.mxu0 0.0
        %1100 = vmatpush.xpose.msra.mxu0 %v1084
        %1101 = vmatpush.xpose.msra.mxu0 %v1082
        %1102 = vmatmul.f32.gmra.mxu0 %v1078
        %v1103 = vpop.f32.mrf.mxu0
        %v1104 = vadd.f32 0.0, %v1103
        %1105 = vmatmul.f32.gmra.mxu0 %v1080
        %v1106 = vpop.f32.mrf.mxu0
        %v1107 = vadd.f32 0.0, %v1106
        %1108 = vdwg.mxu0
        %v1109 = vmul.f32 %v1104, 0.35355338
        %v1110 = vmul.f32 %v1107, 0.35355338
        %1111 = vrot.lane.b32.xlu0 %v365, 72
        %v1112 = vpop.permute.xlu0 %1111
        %1113 = vrot.lane.b32.xlu0 %v368, 72
        %v1114 = vpop.permute.xlu0 %1113
        %1115 = vrot.lane.b32.xlu0 %v1066, 24
        %v1116 = vpop.permute.xlu0 %1115
        %1117 = vrot.lane.b32.xlu0 %v1067, 24
        %v1118 = vpop.permute.xlu0 %1117
        %v1119 = vsel %vm372, %v1112, 0
        %v1121 = vsel %vm372, %v1114, 0
        %v1123 = vsel %vm372, %v1116, 0
        %v1125 = vsel %vm372, %v1118, 0
        %1127 = vmatpush.xpose.msra.mxu0 0.0
        %1128 = vmatpush.xpose.msra.mxu0 0.0
        %1129 = vmatpush.xpose.msra.mxu0 0.0
        %1130 = vmatpush.xpose.msra.mxu0 0.0
        %1131 = vmatpush.xpose.msra.mxu0 0.0
        %1132 = vmatpush.xpose.msra.mxu0 0.0
        %1133 = vmatpush.xpose.msra.mxu0 0.0
        %1134 = vmatpush.xpose.msra.mxu0 0.0
        %1135 = vmatpush.xpose.msra.mxu0 0.0
        %1136 = vmatpush.xpose.msra.mxu0 0.0
        %1137 = vmatpush.xpose.msra.mxu0 0.0
        %1138 = vmatpush.xpose.msra.mxu0 0.0
        %1139 = vmatpush.xpose.msra.mxu0 0.0
        %1140 = vmatpush.xpose.msra.mxu0 0.0
        %1141 = vmatpush.xpose.msra.mxu0 %v1125
        %1142 = vmatpush.xpose.msra.mxu0 %v1123
        %1143 = vmatmul.f32.gmra.mxu0 %v1119
        %v1144 = vpop.f32.mrf.mxu0
        %v1145 = vadd.f32 0.0, %v1144
        %1146 = vmatmul.f32.gmra.mxu0 %v1121
        %v1147 = vpop.f32.mrf.mxu0
        %v1148 = vadd.f32 0.0, %v1147
        %1149 = vdwg.mxu0
        %v1150 = vmul.f32 %v1145, 0.35355338
        %v1151 = vmul.f32 %v1148, 0.35355338
        %v1152 = vsel %vm451, %v1109, -inf
        %1153 = vmax.xlane.f32.xlu0 %v1152
        %v1154 = vpop.xlane.xlu0 %1153
        %v1155 = vsel %vm451, %v1110, -inf
        %1156 = vmax.xlane.f32.xlu0 %v1155
        %v1157 = vpop.xlane.xlu0 %1156
        %v1158 = vsub.f32 %v1109, %v1154
        %v1159 = vsub.f32 %v1110, %v1157
        %v1160 = vmul.f32 %v1158, 1.442695
        %v1161 = vpow.pop %v1160
        %v1162 = vmul.f32 %v1159, 1.442695
        %v1163 = vpow.pop %v1162
        %v1164 = vsel %vm451, %v1161, 0.0
        %1165 = vadd.xlane.f32.xlu0 %v1164
        %v1166 = vpop.xlane.xlu0 %1165
        %v1167 = vsel %vm451, %v1163, 0.0
        %1168 = vadd.xlane.f32.xlu0 %v1167
        %v1169 = vpop.xlane.xlu0 %1168
        %v1170 = vrcp.pop %v1166
        %v1171 = vrcp.pop %v1169
        %v1172 = vmul.f32 %v1166, %v1170
        %v1173 = vmul.f32 %v1169, %v1171
        %v1174 = vsub.f32 2.0, %v1172
        %v1175 = vsub.f32 2.0, %v1173
        %v1176 = vmul.f32 %v1170, %v1174
        %v1177 = vmul.f32 %v1171, %v1175
        %v1178 = vmul.f32 %v1161, %v1176
        %v1179 = vmul.f32 %v1163, %v1177
        %v1180 = vsel %vm451, %v1150, -inf
        %1181 = vmax.xlane.f32.xlu0 %v1180
        %v1182 = vpop.xlane.xlu0 %1181
        %v1183 = vsel %vm451, %v1151, -inf
        %1184 = vmax.xlane.f32.xlu0 %v1183
        %v1185 = vpop.xlane.xlu0 %1184
        %v1186 = vsub.f32 %v1150, %v1182
        %v1187 = vsub.f32 %v1151, %v1185
        %v1188 = vmul.f32 %v1186, 1.442695
        %v1189 = vpow.pop %v1188
        %v1190 = vmul.f32 %v1187, 1.442695
        %v1191 = vpow.pop %v1190
        %v1192 = vsel %vm451, %v1189, 0.0
        %1193 = vadd.xlane.f32.xlu0 %v1192
        %v1194 = vpop.xlane.xlu0 %1193
        %v1195 = vsel %vm451, %v1191, 0.0
        %1196 = vadd.xlane.f32.xlu0 %v1195
        %v1197 = vpop.xlane.xlu0 %1196
        %v1198 = vrcp.pop %v1194
        %v1199 = vrcp.pop %v1197
        %v1200 = vmul.f32 %v1194, %v1198
        %v1201 = vmul.f32 %v1197, %v1199
        %v1202 = vsub.f32 2.0, %v1200
        %v1203 = vsub.f32 2.0, %v1201
        %v1204 = vmul.f32 %v1198, %v1202
        %v1205 = vmul.f32 %v1199, %v1203
        %v1206 = vmul.f32 %v1189, %v1204
        %v1207 = vmul.f32 %v1191, %v1205
        %v1208 = vsub.f32 %v1178, %v1206
        %v1209 = vsub.f32 %v1179, %v1207
        %1210 = vrot.lane.b32.xlu0 %v1066, 16
        %v1211 = vpop.permute.xlu0 %1210
        %1212 = vrot.lane.b32.xlu0 %v1067, 16
        %v1213 = vpop.permute.xlu0 %1212
        %v1217 = vsel %vm451, %v1208, 0
        %v1220 = vsel %vm451, %v1209, 0
        %1222 = vmatpush.msra.mxu0 0.0
        %1223 = vmatpush.msra.mxu0 0.0
        %1224 = vmatpush.msra.mxu0 0.0
        %1225 = vmatpush.msra.mxu0 0.0
        %1226 = vmatpush.msra.mxu0 0.0
        %1227 = vmatpush.msra.mxu0 0.0
        %1228 = vmatpush.msra.mxu0 0.0
        %1229 = vmatpush.msra.mxu0 0.0
        %1230 = vmatpush.msra.mxu0 0.0
        %1231 = vmatpush.msra.mxu0 0.0
        %1232 = vmatpush.msra.mxu0 0.0
        %1233 = vmatpush.msra.mxu0 0.0
        %1234 = vmatpush.msra.mxu0 0.0
        %1235 = vmatpush.msra.mxu0 0.0
        %1236 = vmatpush.msra.mxu0 %v1213
        %1237 = vmatpush.msra.mxu0 %v1211
        %1238 = vmatmul.f32.gmra.mxu0 %v1217
        %v1239 = vpop.f32.mrf.mxu0
        %v1240 = vadd.f32 0.0, %v1239
        %1241 = vmatmul.f32.gmra.mxu0 %v1220
        %v1242 = vpop.f32.mrf.mxu0
        %v1243 = vadd.f32 0.0, %v1242
        %1244 = vdwg.mxu0
        %v1245 = vsel %vm451, %v1240, 0.0
        %1246 = vadd.xlane.f32.xlu0 %v1245
        %v1247 = vpop.xlane.xlu0 %1246
        %v1248 = vsel %vm451, %v1243, 0.0
        %1249 = vadd.xlane.f32.xlu0 %v1248
        %v1250 = vpop.xlane.xlu0 %1249
        %v1251 = vmul.f32 %v1247, %v557
        %v1252 = vmul.f32 %v1250, %v557
        %v1253 = vsub.f32 %v1240, %v1251
        %v1254 = vsub.f32 %v1243, %v1252
        %v1255 = vmul.f32 %v1253, %v1253
        %v1256 = vmul.f32 %v1254, %v1254
        %v1257 = vsel %vm451, %v1255, 0.0
        %1258 = vadd.xlane.f32.xlu0 %v1257
        %v1259 = vpop.xlane.xlu0 %1258
        %v1260 = vsel %vm451, %v1256, 0.0
        %1261 = vadd.xlane.f32.xlu0 %v1260
        %v1262 = vpop.xlane.xlu0 %1261
        %v1263 = vmul.f32 %v1259, %v557
        %v1264 = vmul.f32 %v1262, %v557
        %v1265 = vadd.f32 %v1263, 1e-05
        %v1266 = vadd.f32 %v1264, 1e-05
        %v1267 = vrsqrt.pop %v1265
        %v1268 = vmul.f32 %v1267, %v1265
        %v1269 = vmul.f32 %v1268, %v1267
        %v1270 = vmul.f32 0.5, %v1269
        %v1271 = vsub.f32 1.5, %v1270
        %v1272 = vmul.f32 %v1267, %v1271
        %vm1273 = vweird.f32 %v1265
        %vm1274 = vweird.f32 %v1267
        %vm1275 = vmor %vm1273, %vm1274
        %v1276 = vsel %vm1275, %v1267, %v1272
        %v1277 = vrsqrt.pop %v1266
        %v1278 = vmul.f32 %v1277, %v1266
        %v1279 = vmul.f32 %v1278, %v1277
        %v1280 = vmul.f32 0.5, %v1279
        %v1281 = vsub.f32 1.5, %v1280
        %v1282 = vmul.f32 %v1277, %v1281
        %vm1283 = vweird.f32 %v1266
        %vm1284 = vweird.f32 %v1277
        %vm1285 = vmor %vm1283, %vm1284
        %v1286 = vsel %vm1285, %v1277, %v1282
        %v1287 = vmul.f32 %v1253, %v1276
        %v1288 = vmul.f32 %v1254, %v1286
        %1291 = vrot.lane.b32.xlu0 %v1287, 48
        %v1292 = vpop.permute.xlu0 %1291
        %1293 = vrot.lane.b32.xlu0 %v1288, 48
        %v1294 = vpop.permute.xlu0 %1293
        %vm1297 = vcmask 523648
        %1298 = vst.msk [vmem:[#allocation2] sm:$0xff] %vm1297, %v1292
        %1299 = vst.msk [vmem:[#allocation2 + $0x8] sm:$0xff] %vm1297, %v1294
        %v1300 = vld [vmem:[#allocation2] sm:$0xff]
        %v1301 = vld [vmem:[#allocation2 + $0x8] sm:$0xff]
        %v1302 = vld [vmem:[%s303] sm:$0xff]
        %v1303 = vld [vmem:[%s303 + $0x8] sm:$0xff]
        %v1304 = vld [vmem:[%s303 + $0x10] sm:$0xff]
        %v1305 = vld [vmem:[%s303 + $0x18] sm:$0xff]
        %v1306 = vld [vmem:[%s303 + $0x20] sm:$0xff]
        %v1307 = vld [vmem:[%s303 + $0x28] sm:$0xff]
        %v1308 = vld [vmem:[%s303 + $0x30] sm:$0xff]
        %v1309 = vld [vmem:[%s303 + $0x38] sm:$0xff]
        %v1310 = vld [vmem:[%s4] sm:$0x1]
        %v1312 = vperm.slane %v1310, 0
        %vm1314 = vcmask 523264
        %v1316 = vsel %vm1314, %v1300, 0
        %v1319 = vsel %vm1314, %v1301, 0
        %1321 = vmatpush.msra.mxu0 0.0
        %1322 = vmatpush.msra.mxu0 0.0
        %1323 = vmatpush.msra.mxu0 0.0
        %1324 = vmatpush.msra.mxu0 0.0
        %1325 = vmatpush.msra.mxu0 0.0
        %1326 = vmatpush.msra.mxu0 0.0
        %1327 = vmatpush.msra.mxu0 0.0
        %1328 = vmatpush.msra.mxu0 0.0
        %1329 = vmatpush.msra.mxu0 %v1309
        %1330 = vmatpush.msra.mxu0 %v1308
        %1331 = vmatpush.msra.mxu0 %v1307
        %1332 = vmatpush.msra.mxu0 %v1306
        %1333 = vmatpush.msra.mxu0 %v1305
        %1334 = vmatpush.msra.mxu0 %v1304
        %1335 = vmatpush.msra.mxu0 %v1303
        %1336 = vmatpush.msra.mxu0 %v1302
        %1337 = vmatmul.f32.gmra.mxu0 %v1316
        %v1338 = vpop.f32.mrf.mxu0
        %v1339 = vadd.f32 %v1312, %v1338
        %1340 = vmatmul.f32.gmra.mxu0 %v1319
        %v1341 = vpop.f32.mrf.mxu0
        %v1342 = vadd.f32 %v1312, %v1341
        %1343 = vdwg.mxu0
        %1344 = vst.msk [vmem:[%s283] sm:$0xff] %vm311, %v1339
        %1345 = vst.msk [vmem:[%s283 + $0x8] sm:$0xff] %vm311, %v1342
        %s1346 = sand.u32 %s173, 1
        %s1347 = scalar_lea.sflag [#allocation5], %s1346
        %s1348 = sand.u32 %s173, 1
        %s1349 = smul.addr %s1348, 16
        %s1350 = scalar_lea.vmem [#allocation4], %s1349
        // Predicated region
        $region41: #{tpu_custom_call.1} parent=39 // pred_check
          %p1351 = pneg %p183
        $region42: #{tpu_custom_call.1} parent=39 // pred_check_branch
          %1353 = sbr.rel (%p1351) target = $region44
        $region43: #{tpu_custom_call.1} parent=39 // pred_region
          %s1354 = smul.u32 2, %s25
          %1356 = vsyncadd %s1347, 0
          %s1357 = smul.addr %s24, 2
          %s1358 = sadd.s32 %s1354, %s1357
          %s1359 = smul.addr %s1358, 8
          %s1360 = scalar_lea.hbm %s5, %s1359
          %s1361 = sshll.u32 %s1350, 4
          %s1362 = int_to_ptr.vmem [resolvable:$true] %s1361
          %s1363 = sshll.u32 %s1360, 4
          %s1364 = int_to_ptr.hbm [resolvable:$true] %s1363
          %1369 = dma.vmem_to_hbm [thread:$0]  %s1362, 256, %s1364, %s1347, 128, 128, 8
        $region44: #{tpu_custom_call.1} parent=39 // pred_fallthru
          _
      $region40: #{tpu_custom_call.1} parent=5 // pred_fallthru
        _
      %p1370 = scmp.le.s32.totalorder 2, %s14
      // Predicated region
      $region45: #{tpu_custom_call.1} parent=5 // pred_check
        %p1371 = pneg %p1370
      $region46: #{tpu_custom_call.1} parent=5 // pred_check_branch
        %1373 = sbr.rel (%p1371) target = $region48
      $region47: #{tpu_custom_call.1} parent=5 // pred_region
        %s1374 = ssub.s32 %s14, 2
        // Predicated region
        $region49: #{tpu_custom_call.1} parent=47 // pred_check
          %p1375 = pneg %p189
        $region50: #{tpu_custom_call.1} parent=47 // pred_check_branch
          %1377 = sbr.rel (%p1375) target = $region52
        $region51: #{tpu_custom_call.1} parent=47 // pred_region
          %s1378 = sand.u32 %s174, 1
          %s1379 = scalar_lea.sflag [#allocation5], %s1378
          %s1380 = sand.u32 %s174, 1
          %s1381 = smul.addr %s1380, 16
          %s1382 = scalar_lea.vmem [#allocation4], %s1381
          %1384 = dma.done %s1379, 256
        $region52: #{tpu_custom_call.1} parent=47 // pred_fallthru
          _
      $region48: #{tpu_custom_call.1} parent=5 // pred_fallthru
        _
    $region6: #{tpu_custom_call.1} parent=1 // loop_footer
      %s18 = sadd.s32 1, %s14
    $region7: #{tpu_custom_call.1} parent=1 // loop_footer_branch
      %13 = sbr.rel target = $region3
    $region8: #{tpu_custom_call.1} parent=1 // loop_exit
      _
    %1385 = vsyncpa [#allocation5], 1
    %s1386 = scalar_lea.sflag [#allocation5], 1
    %1387 = vsyncpa %s1386, 1

</llo_original>
